<compile_context>
chip_gen: v5e
topology: v5e:2x2
jax: 0.10.0
libtpu: 0.0.40
codegen_flags: <defaults>
</compile_context>

<pallas_src>
import functools

import jax
import jax.numpy as jnp
from jax.experimental import pallas as pl
from jax.experimental.pallas import tpu as pltpu


def _round_up(x, m):
    return (x + m - 1) // m * m


def _divisors(n):
    return [d for d in range(1, n + 1) if n % d == 0]


def _silu(x):
    # x * sigmoid(x); exp and the (approx) reciprocal both run on the EUP slot.
    return x * pl.reciprocal(1.0 + jnp.exp(-x), approx=True)


# ---------------------------------------------------------------------------
# Kernel
# ---------------------------------------------------------------------------
def _mv2block_kernel(x_ref, xt_ref, xb_ref, w1_ref, b1_ref, wdw_ref, b2_ref,
                     w3_ref, b3_ref, o_ref, *, identity):
    """One (batch-tile, H-tile) block per grid step. All operands are in VMEM."""
    NB, TH, W, Cin = x_ref.shape
    hidden = w1_ref.shape[1]
    Cout = w3_ref.shape[1]
    ih = pl.program_id(1)
    n_h = pl.num_programs(1)
    sd = wdw_ref.dtype                       # stencil dtype: bf16 (f32 on v5*)

    # (TH+2)-row input slab: [top halo row, TH main rows, bottom halo row].
    x_slab = jnp.concatenate([xt_ref[...], x_ref[...], xb_ref[...]], axis=1)
    xm = x_slab.reshape(NB * (TH + 2) * W, Cin)          # bf16, channels on lanes

    # ---- 1x1 expand conv (bf16 MXU; BN scale folded into w1) + bias + SiLU ----
    h = jnp.dot(xm, w1_ref[...], preferred_element_type=jnp.float32)
    h = _silu(h + b1_ref[...])                           # f32

    # ---- 3x3 depthwise conv, stride 1, padding 1 ----
    slab = h.astype(sd).reshape(NB, TH + 2, W, hidden)

    # Zero the H-halo rows that fall outside the image (the clamped index_map
    # fetched an in-range row, which is discarded here). Scalar-predicated.
    top_keep = (ih > 0).astype(sd)
    bot_keep = (ih < n_h - 1).astype(sd)
    slab = jnp.concatenate(
        [slab[:, 0:1] * top_keep, slab[:, 1:TH + 1],
         slab[:, TH + 1:TH + 2] * bot_keep], axis=1)

    # W halo: shifted copies via zero-column concat (sublane shift on the XLU).
    # No scratch buffer and no misaligned VMEM stores.
    zcol = jnp.zeros((NB, TH + 2, 1, hidden), sd)
    slab_l = jnp.concatenate([zcol, slab[:, :, :W - 1, :]], axis=2)  # col j = h[.., j-1, :]
    slab_r = jnp.concatenate([slab[:, :, 1:, :], zcol], axis=2)      # col j = h[.., j+1, :]

    wdw = wdw_ref[...]                                   # (9, hidden), read once
    acc = jnp.zeros((NB, TH, W, hidden), jnp.float32)
    for di in range(3):                                  # taps multiply in sd, accumulate f32
        acc = acc + (slab_l[:, di:di + TH] * wdw[3 * di + 0]).astype(jnp.float32)
        acc = acc + (slab[:, di:di + TH] * wdw[3 * di + 1]).astype(jnp.float32)
        acc = acc + (slab_r[:, di:di + TH] * wdw[3 * di + 2]).astype(jnp.float32)

    a = _silu(acc.reshape(NB * TH * W, hidden) + b2_ref[...])        # f32

    # ---- 1x1 project conv (bf16 MXU; BN scale folded into w3) + bias ----
    y = jnp.dot(a.astype(jnp.bfloat16), w3_ref[...],
                preferred_element_type=jnp.float32)
    y = y + b3_ref[...]

    if identity:                                         # residual connection
        y = y + x_slab[:, 1:TH + 1].astype(jnp.float32).reshape(NB * TH * W, Cin)

    # TODO(synk): for real stages, pad channels to 128 lanes in the wrapper (or
    # emit a lane-dense (N, H, W*Cout) slab) so this store is not a masked
    # partial store; with Cout=8 here the cost is negligible.
    o_ref[...] = y.reshape(NB, TH, W, Cout).astype(o_ref.dtype)


# ---------------------------------------------------------------------------
# Tiling / VMEM sizing
# ---------------------------------------------------------------------------
def _vmem_capacity_bytes():
    try:
        info = pltpu.get_tpu_info()
        cap = getattr(info, "vmem_capacity_bytes", None)
        if cap:
            return int(cap)
    except Exception:
        pass
    return 64 * 1024 * 1024          # conservative (v7x per-core VMEM)


def _stencil_dtype():
    """bf16 stencil on bf16-capable VPUs (v6e/v7x); f32 on v5* (no bf16 VALU)."""
    try:
        kind = jax.devices()[0].device_kind.lower()
        if "v5" in kind:
            return jnp.float32
    except Exception:
        pass
    return jnp.bfloat16


def _blk_bytes(shape, elt):
    """Padded VMEM bytes of a block: last dim -> 128 lanes, 2nd-last -> sublanes."""
    lead = 1
    for d in shape[:-2]:
        lead *= d
    sub = 32 // elt                  # 8 sublanes for f32, 16 for bf16
    return lead * _round_up(max(shape[-2], 1), sub) * _round_up(shape[-1], 128) * elt


def _vmem_bytes_estimate(NB, TH, W, Cin, hidden, Cout, sbytes):
    bf16, f32 = 2, 4
    x_blk = _blk_bytes((NB, TH, W, Cin), bf16)
    halo = 2 * _blk_bytes((NB, 1, W, Cin), bf16)
    o_blk = _blk_bytes((NB, TH, W, Cout), f32)
    wts = (_blk_bytes((Cin, hidden), bf16) + _blk_bytes((9, hidden), sbytes)
           + _blk_bytes((hidden, Cout), bf16)
           + 2 * _blk_bytes((1, hidden), f32) + _blk_bytes((1, Cout), f32))
    blocks = 2 * (x_blk + halo + o_blk + wts)            # double-buffered pipeline
    temps = (_blk_bytes((NB, TH + 2, W, hidden), f32)    # h before the stencil cast
             + 3 * _blk_bytes((NB, TH + 2, W, hidden), sbytes)   # slab, slab_l, slab_r
             + 2 * _blk_bytes((NB, TH, W, hidden), f32)  # acc, a
             + _blk_bytes((NB, TH, W, hidden), bf16)     # a cast for the MXU
             + 2 * _blk_bytes((NB, TH, W, Cout), f32))   # y, residual sum
    return blocks + temps


def _choose_tiles(N, H, W, Cin, hidden, Cout, sbytes, budget, target_steps=8):
    th_cands = [d for d in _divisors(H) if d >= min(4, H)] or _divisors(H)
    best = None
    for NB in _divisors(N):
        for TH in th_cands:
            est = _vmem_bytes_estimate(NB, TH, W, Cin, hidden, Cout, sbytes)
            if est > budget:
                continue
            steps = (N // NB) * (H // TH)
            key = (min(steps, target_steps), NB * TH, TH)
            if best is None or key > best[0]:
                best = (key, NB, TH, est)
    if best is None:                                     # nothing fits: minimal tile
        NB, TH = 1, min(th_cands)
        return NB, TH, _vmem_bytes_estimate(NB, TH, W, Cin, hidden, Cout, sbytes)
    return best[1], best[2], best[3]


# ---------------------------------------------------------------------------
# Wrapper
# ---------------------------------------------------------------------------
def mv2block_pallas(x_nhwc, kparams, *, stride=1, batch_tile=None, h_tile=None):
    """x_nhwc: (N, H, W, Cin) float32. Returns (N, H, W, Cout) float32."""
    # TODO(synk): stride=2 and the expand_ratio==1 variant are not implemented.
    assert stride == 1, "only stride=1 is implemented"
    w1, b1, wdw, b2, w3, b3 = kparams
    N, H, W, Cin = x_nhwc.shape
    hidden = w1.shape[1]
    Cout = w3.shape[1]
    identity = (stride == 1) and (Cin == Cout)
    sbytes = jnp.dtype(wdw.dtype).itemsize

    vmem_cap = _vmem_capacity_bytes()
    NB, TH, est = _choose_tiles(N, H, W, Cin, hidden, Cout, sbytes,
                                budget=vmem_cap // 2)
    if batch_tile is not None:
        NB = batch_tile
        assert N % NB == 0, "batch_tile must divide N"
    if h_tile is not None:
        TH = h_tile
        assert H % TH == 0, "h_tile must divide H"
    est = _vmem_bytes_estimate(NB, TH, W, Cin, hidden, Cout, sbytes)
    vmem_limit = int(min(max(2 * est, 32 * 1024 * 1024), int(0.9 * vmem_cap)))

    x_bf = x_nhwc.astype(jnp.bfloat16)       # halve the dominant HBM read

    kernel = functools.partial(_mv2block_kernel, identity=identity)
    rep = lambda n, ih: (0, 0)               # weights / biases replicated

    return pl.pallas_call(
        kernel,
        out_shape=jax.ShapeDtypeStruct((N, H, W, Cout), jnp.float32),
        grid_spec=pltpu.PrefetchScalarGridSpec(
            num_scalar_prefetch=0,
            grid=(N // NB, H // TH),
            in_specs=[
                pl.BlockSpec((NB, TH, W, Cin), lambda n, ih: (n, ih, 0, 0)),   # x (main rows)
                pl.BlockSpec((NB, 1, W, Cin),                                  # top halo row
                             lambda n, ih: (n, jnp.maximum(ih * TH - 1, 0), 0, 0)),
                pl.BlockSpec((NB, 1, W, Cin),                                  # bottom halo row
                             lambda n, ih: (n, jnp.minimum((ih + 1) * TH, H - 1), 0, 0)),
                pl.BlockSpec((Cin, hidden), rep),   # w1 (1x1 expand, bf16, BN folded)
                pl.BlockSpec((1, hidden), rep),     # bn1 bias
                pl.BlockSpec((9, hidden), rep),     # depthwise 3x3 taps (BN folded)
                pl.BlockSpec((1, hidden), rep),     # bn2 bias
                pl.BlockSpec((hidden, Cout), rep),  # w3 (1x1 project, bf16, BN folded)
                pl.BlockSpec((1, Cout), rep),       # bn3 bias
            ],
            out_specs=pl.BlockSpec((NB, TH, W, Cout), lambda n, ih: (n, ih, 0, 0)),
        ),
        compiler_params=pltpu.CompilerParams(
            dimension_semantics=("parallel", "parallel"),
            vmem_limit_bytes=vmem_limit),
    )(x_bf, x_bf, x_bf, w1, b1, wdw, b2, w3, b3)


# ---------------------------------------------------------------------------
# Parameters / reference
# ---------------------------------------------------------------------------
def make_params(key, inp, oup, expand_ratio=4, eps=1e-5):
    """Deterministic synthetic weights. BN (eval mode) folded to scale/bias."""
    hidden = round(inp * expand_ratio)
    ks = jax.random.split(key, 15)

    def bn_fold(kg, kb, km, kv, c):
        gamma = jax.random.uniform(kg, (1, c), minval=0.5, maxval=1.5)
        beta = jax.random.normal(kb, (1, c)) * 0.1
        mean = jax.random.normal(km, (1, c)) * 0.1
        var = jax.random.uniform(kv, (1, c), minval=0.5, maxval=1.5)
        scale = gamma / jnp.sqrt(var + eps)
        bias = beta - mean * scale
        return scale.astype(jnp.float32), bias.astype(jnp.float32)

    # PyTorch conv weights: (hidden,inp,1,1) / (hidden,1,3,3) / (oup,hidden,1,1)
    # stored pre-transposed for matmul / per-channel tap use.
    w1 = (jax.random.normal(ks[0], (inp, hidden)) * 0.2).astype(jnp.float32)
    wdw = (jax.random.normal(ks[1], (9, hidden)) * 0.2).astype(jnp.float32)
    w3 = (jax.random.normal(ks[2], (hidden, oup)) * 0.2).astype(jnp.float32)
    s1, b1 = bn_fold(ks[3], ks[4], ks[5], ks[6], hidden)
    s2, b2 = bn_fold(ks[7], ks[8], ks[9], ks[10], hidden)
    s3, b3 = bn_fold(ks[11], ks[12], ks[13], ks[14], oup)
    return (w1, s1, b1, wdw, s2, b2, w3, s3, b3)


def fold_for_kernel(params, stencil_dtype=jnp.bfloat16):
    """Fold BN scales into conv weights; cast matmul weights to bf16."""
    w1, s1, b1, wdw, s2, b2, w3, s3, b3 = params
    w1f = (w1 * s1).astype(jnp.bfloat16)       # scale per output column
    wdwf = (wdw * s2).astype(stencil_dtype)    # per-channel taps, stencil dtype
    w3f = (w3 * s3).astype(jnp.bfloat16)
    return (w1f, b1, wdwf, b2, w3f, b3)


def mv2block_ref(x_nhwc, params, identity):
    """Pure-JAX f32 reference with the module's math (for validation)."""
    w1, s1, b1, wdw, s2, b2, w3, s3, b3 = params
    N, H, W, Cin = x_nhwc.shape
    h = jnp.einsum('nhwc,cd->nhwd', x_nhwc, w1)
    h = h * s1 + b1
    h = h * jax.nn.sigmoid(h)
    hp = jnp.pad(h, ((0, 0), (1, 1), (1, 1), (0, 0)))
    out = jnp.zeros_like(h)
    for di in range(3):
        for dj in range(3):
            out = out + hp[:, di:di + H, dj:dj + W, :] * wdw[3 * di + dj]
    out = out * s2 + b2
    out = out * jax.nn.sigmoid(out)
    y = jnp.einsum('nhwd,de->nhwe', out, w3)
    y = y * s3 + b3
    if identity:
        y = y + x_nhwc
    return y


if __name__ == "__main__":
    key = jax.random.PRNGKey(0)
    kx, kp = jax.random.split(key)

    # Small shapes: N=2, C_in=C_out=8, H=W=16, expand_ratio=4 -> hidden=32.
    N, C, H, W = 2, 8, 16, 16
    inp = oup = C
    x_nchw = jax.random.normal(kx, (N, C, H, W), dtype=jnp.float32)
    params = make_params(kp, inp, oup, expand_ratio=4)
    kparams = fold_for_kernel(params, stencil_dtype=_stencil_dtype())

    # NCHW (PyTorch convention) -> NHWC for the kernel.
    x_nhwc = jnp.transpose(x_nchw, (0, 2, 3, 1))
    out_nhwc = mv2block_pallas(x_nhwc, kparams, stride=1)
    out_nchw = jnp.transpose(out_nhwc, (0, 3, 1, 2))
    jax.block_until_ready(out_nchw)

    ref_nhwc = mv2block_ref(x_nhwc, params, identity=True)
    ref_nchw = jnp.transpose(ref_nhwc, (0, 3, 1, 2))
    max_err = float(jnp.max(jnp.abs(out_nchw - ref_nchw)))
    assert max_err < 5e-2, f"max abs error too large: {max_err}"

    print("KERNEL_OK")
</pallas_src>

<mosaic_0001>
module attributes {stable_mosaic.version = 11 : i64} {
  func.func @_mv2block_kernel(%arg0: i32, %arg1: i32, %arg2: memref<1x4x16x8xbf16, #tpu.memory_space<vmem>>, %arg3: memref<1x1x16x8xbf16, #tpu.memory_space<vmem>>, %arg4: memref<1x1x16x8xbf16, #tpu.memory_space<vmem>>, %arg5: memref<8x32xbf16, #tpu.memory_space<vmem>>, %arg6: memref<1x32xf32, #tpu.memory_space<vmem>>, %arg7: memref<9x32xbf16, #tpu.memory_space<vmem>>, %arg8: memref<1x32xf32, #tpu.memory_space<vmem>>, %arg9: memref<32x8xbf16, #tpu.memory_space<vmem>>, %arg10: memref<1x8xf32, #tpu.memory_space<vmem>>, %arg11: memref<1x4x16x8xf32, #tpu.memory_space<vmem>>) attributes {dimension_semantics = [#tpu.dimension_semantics<parallel>, #tpu.dimension_semantics<parallel>], iteration_bounds = array<i64: 2, 4>, scalar_prefetch = 0 : i64, scratch_operands = 0 : i64, tpu.core_type = #tpu.core_type<tc>, window_params = [{transform_indices = @transform_0, window_bounds = array<i64: 1, 4, 16, 8>}, {transform_indices = @transform_1, window_bounds = array<i64: 1, 1, 16, 8>}, {transform_indices = @transform_2, window_bounds = array<i64: 1, 1, 16, 8>}, {pipeline_mode = #tpu.pipeline_mode<synchronous>, transform_indices = @transform_3, window_bounds = array<i64: 8, 32>}, {pipeline_mode = #tpu.pipeline_mode<synchronous>, transform_indices = @transform_4, window_bounds = array<i64: 1, 32>}, {pipeline_mode = #tpu.pipeline_mode<synchronous>, transform_indices = @transform_5, window_bounds = array<i64: 9, 32>}, {pipeline_mode = #tpu.pipeline_mode<synchronous>, transform_indices = @transform_6, window_bounds = array<i64: 1, 32>}, {pipeline_mode = #tpu.pipeline_mode<synchronous>, transform_indices = @transform_7, window_bounds = array<i64: 32, 8>}, {pipeline_mode = #tpu.pipeline_mode<synchronous>, transform_indices = @transform_8, window_bounds = array<i64: 1, 8>}, {transform_indices = @transform_9, window_bounds = array<i64: 1, 4, 16, 8>}]} {
    %c0 = arith.constant 0 : index
    %c0_0 = arith.constant 0 : index
    %c0_1 = arith.constant 0 : index
    %c0_2 = arith.constant 0 : index
    %0 = vector.load %arg3[%c0, %c0_0, %c0_1, %c0_2] : memref<1x1x16x8xbf16, #tpu.memory_space<vmem>>, vector<1x1x16x8xbf16>
    %c0_3 = arith.constant 0 : index
    %c0_4 = arith.constant 0 : index
    %c0_5 = arith.constant 0 : index
    %c0_6 = arith.constant 0 : index
    %1 = vector.load %arg2[%c0_3, %c0_4, %c0_5, %c0_6] : memref<1x4x16x8xbf16, #tpu.memory_space<vmem>>, vector<1x4x16x8xbf16>
    %c0_7 = arith.constant 0 : index
    %c0_8 = arith.constant 0 : index
    %c0_9 = arith.constant 0 : index
    %c0_10 = arith.constant 0 : index
    %2 = vector.load %arg4[%c0_7, %c0_8, %c0_9, %c0_10] : memref<1x1x16x8xbf16, #tpu.memory_space<vmem>>, vector<1x1x16x8xbf16>
    %3 = tpu.concatenate %0, %1, %2 in 1 : vector<1x1x16x8xbf16>, vector<1x4x16x8xbf16>, vector<1x1x16x8xbf16> -> vector<1x6x16x8xbf16>
    %4 = vector.shape_cast %3 : vector<1x6x16x8xbf16> to vector<96x8xbf16>
    %c0_11 = arith.constant 0 : index
    %c0_12 = arith.constant 0 : index
    %5 = vector.load %arg5[%c0_11, %c0_12] : memref<8x32xbf16, #tpu.memory_space<vmem>>, vector<8x32xbf16>
    %cst = arith.constant dense<0.000000e+00> : vector<96x32xf32>
    %6 = tpu.matmul %4, %5, %cst {dimension_numbers = #tpu.dot_dimension_numbers<[1], [0], [0], [1], [0, 0, 1, 1], [], []>} : vector<96x8xbf16>, vector<8x32xbf16>, vector<96x32xf32> -> vector<96x32xf32>
    %c0_13 = arith.constant 0 : index
    %c0_14 = arith.constant 0 : index
    %7 = vector.load %arg6[%c0_13, %c0_14] : memref<1x32xf32, #tpu.memory_space<vmem>>, vector<1x32xf32>
    %8 = vector.broadcast %7 : vector<1x32xf32> to vector<96x32xf32>
    %9 = arith.addf %6, %8 : vector<96x32xf32>
    %cst_15 = arith.constant 0.000000e+00 : f32
    %10 = vector.broadcast %cst_15 : f32 to vector<96x32xf32>
    %11 = arith.subf %10, %9 : vector<96x32xf32>
    %12 = math.exp %11 : vector<96x32xf32>
    %cst_16 = arith.constant 1.000000e+00 : f32
    %13 = vector.broadcast %cst_16 : f32 to vector<96x32xf32>
    %14 = arith.addf %13, %12 : vector<96x32xf32>
    %15 = tpu.reciprocal %14 {approx = true} : vector<96x32xf32> -> vector<96x32xf32>
    %16 = arith.mulf %9, %15 : vector<96x32xf32>
    %17 = arith.truncf %16 : vector<96x32xf32> to vector<96x32xbf16>
    %18 = vector.shape_cast %17 : vector<96x32xbf16> to vector<1x6x16x32xbf16>
    %c0_i32 = arith.constant 0 : i32
    %19 = arith.cmpi sgt, %arg1, %c0_i32 : i32
    %20 = arith.extui %19 : i1 to i32
    %21 = arith.sitofp %20 : i32 to f32
    %22 = arith.truncf %21 : f32 to bf16
    %c3_i32 = arith.constant 3 : i32
    %23 = arith.cmpi slt, %arg1, %c3_i32 : i32
    %24 = arith.extui %23 : i1 to i32
    %25 = arith.sitofp %24 : i32 to f32
    %26 = arith.truncf %25 : f32 to bf16
    %27 = vector.extract_strided_slice %18 {offsets = [0, 0, 0, 0], sizes = [1, 1, 16, 32], strides = [1, 1, 1, 1]} : vector<1x6x16x32xbf16> to vector<1x1x16x32xbf16>
    %28 = vector.broadcast %22 : bf16 to vector<1x1x16x32xbf16>
    %29 = arith.mulf %27, %28 : vector<1x1x16x32xbf16>
    %30 = vector.extract_strided_slice %18 {offsets = [0, 1, 0, 0], sizes = [1, 4, 16, 32], strides = [1, 1, 1, 1]} : vector<1x6x16x32xbf16> to vector<1x4x16x32xbf16>
    %31 = vector.extract_strided_slice %18 {offsets = [0, 5, 0, 0], sizes = [1, 1, 16, 32], strides = [1, 1, 1, 1]} : vector<1x6x16x32xbf16> to vector<1x1x16x32xbf16>
    %32 = vector.broadcast %26 : bf16 to vector<1x1x16x32xbf16>
    %33 = arith.mulf %31, %32 : vector<1x1x16x32xbf16>
    %34 = tpu.concatenate %29, %30, %33 in 1 : vector<1x1x16x32xbf16>, vector<1x4x16x32xbf16>, vector<1x1x16x32xbf16> -> vector<1x6x16x32xbf16>
    %cst_17 = arith.constant 0.000000e+00 : bf16
    %35 = vector.broadcast %cst_17 : bf16 to vector<1x6x1x32xbf16>
    %36 = vector.extract_strided_slice %34 {offsets = [0, 0, 0, 0], sizes = [1, 6, 15, 32], strides = [1, 1, 1, 1]} : vector<1x6x16x32xbf16> to vector<1x6x15x32xbf16>
    %37 = tpu.concatenate %35, %36 in 2 : vector<1x6x1x32xbf16>, vector<1x6x15x32xbf16> -> vector<1x6x16x32xbf16>
    %38 = vector.extract_strided_slice %34 {offsets = [0, 0, 1, 0], sizes = [1, 6, 15, 32], strides = [1, 1, 1, 1]} : vector<1x6x16x32xbf16> to vector<1x6x15x32xbf16>
    %39 = tpu.concatenate %38, %35 in 2 : vector<1x6x15x32xbf16>, vector<1x6x1x32xbf16> -> vector<1x6x16x32xbf16>
    %c0_18 = arith.constant 0 : index
    %c0_19 = arith.constant 0 : index
    %40 = vector.load %arg7[%c0_18, %c0_19] : memref<9x32xbf16, #tpu.memory_space<vmem>>, vector<9x32xbf16>
    %cst_20 = arith.constant 0.000000e+00 : f32
    %41 = vector.broadcast %cst_20 : f32 to vector<1x4x16x32xf32>
    %42 = vector.extract_strided_slice %37 {offsets = [0, 0, 0, 0], sizes = [1, 4, 16, 32], strides = [1, 1, 1, 1]} : vector<1x6x16x32xbf16> to vector<1x4x16x32xbf16>
    %43 = vector.extract_strided_slice %40 {offsets = [0, 0], sizes = [1, 32], strides = [1, 1]} : vector<9x32xbf16> to vector<1x32xbf16>
    %44 = vector.shape_cast %43 : vector<1x32xbf16> to vector<32xbf16>
    %45 = vector.shape_cast %44 : vector<32xbf16> to vector<1x1x1x32xbf16>
    %46 = vector.broadcast %45 : vector<1x1x1x32xbf16> to vector<1x4x16x32xbf16>
    %47 = arith.mulf %42, %46 : vector<1x4x16x32xbf16>
    %48 = arith.extf %47 : vector<1x4x16x32xbf16> to vector<1x4x16x32xf32>
    %49 = arith.addf %41, %48 : vector<1x4x16x32xf32>
    %50 = vector.extract_strided_slice %34 {offsets = [0, 0, 0, 0], sizes = [1, 4, 16, 32], strides = [1, 1, 1, 1]} : vector<1x6x16x32xbf16> to vector<1x4x16x32xbf16>
    %51 = vector.extract_strided_slice %40 {offsets = [1, 0], sizes = [1, 32], strides = [1, 1]} : vector<9x32xbf16> to vector<1x32xbf16>
    %52 = vector.shape_cast %51 : vector<1x32xbf16> to vector<32xbf16>
    %53 = vector.shape_cast %52 : vector<32xbf16> to vector<1x1x1x32xbf16>
    %54 = vector.broadcast %53 : vector<1x1x1x32xbf16> to vector<1x4x16x32xbf16>
    %55 = arith.mulf %50, %54 : vector<1x4x16x32xbf16>
    %56 = arith.extf %55 : vector<1x4x16x32xbf16> to vector<1x4x16x32xf32>
    %57 = arith.addf %49, %56 : vector<1x4x16x32xf32>
    %58 = vector.extract_strided_slice %39 {offsets = [0, 0, 0, 0], sizes = [1, 4, 16, 32], strides = [1, 1, 1, 1]} : vector<1x6x16x32xbf16> to vector<1x4x16x32xbf16>
    %59 = vector.extract_strided_slice %40 {offsets = [2, 0], sizes = [1, 32], strides = [1, 1]} : vector<9x32xbf16> to vector<1x32xbf16>
    %60 = vector.shape_cast %59 : vector<1x32xbf16> to vector<32xbf16>
    %61 = vector.shape_cast %60 : vector<32xbf16> to vector<1x1x1x32xbf16>
    %62 = vector.broadcast %61 : vector<1x1x1x32xbf16> to vector<1x4x16x32xbf16>
    %63 = arith.mulf %58, %62 : vector<1x4x16x32xbf16>
    %64 = arith.extf %63 : vector<1x4x16x32xbf16> to vector<1x4x16x32xf32>
    %65 = arith.addf %57, %64 : vector<1x4x16x32xf32>
    %66 = vector.extract_strided_slice %37 {offsets = [0, 1, 0, 0], sizes = [1, 4, 16, 32], strides = [1, 1, 1, 1]} : vector<1x6x16x32xbf16> to vector<1x4x16x32xbf16>
    %67 = vector.extract_strided_slice %40 {offsets = [3, 0], sizes = [1, 32], strides = [1, 1]} : vector<9x32xbf16> to vector<1x32xbf16>
    %68 = vector.shape_cast %67 : vector<1x32xbf16> to vector<32xbf16>
    %69 = vector.shape_cast %68 : vector<32xbf16> to vector<1x1x1x32xbf16>
    %70 = vector.broadcast %69 : vector<1x1x1x32xbf16> to vector<1x4x16x32xbf16>
    %71 = arith.mulf %66, %70 : vector<1x4x16x32xbf16>
    %72 = arith.extf %71 : vector<1x4x16x32xbf16> to vector<1x4x16x32xf32>
    %73 = arith.addf %65, %72 : vector<1x4x16x32xf32>
    %74 = vector.extract_strided_slice %34 {offsets = [0, 1, 0, 0], sizes = [1, 4, 16, 32], strides = [1, 1, 1, 1]} : vector<1x6x16x32xbf16> to vector<1x4x16x32xbf16>
    %75 = vector.extract_strided_slice %40 {offsets = [4, 0], sizes = [1, 32], strides = [1, 1]} : vector<9x32xbf16> to vector<1x32xbf16>
    %76 = vector.shape_cast %75 : vector<1x32xbf16> to vector<32xbf16>
    %77 = vector.shape_cast %76 : vector<32xbf16> to vector<1x1x1x32xbf16>
    %78 = vector.broadcast %77 : vector<1x1x1x32xbf16> to vector<1x4x16x32xbf16>
    %79 = arith.mulf %74, %78 : vector<1x4x16x32xbf16>
    %80 = arith.extf %79 : vector<1x4x16x32xbf16> to vector<1x4x16x32xf32>
    %81 = arith.addf %73, %80 : vector<1x4x16x32xf32>
    %82 = vector.extract_strided_slice %39 {offsets = [0, 1, 0, 0], sizes = [1, 4, 16, 32], strides = [1, 1, 1, 1]} : vector<1x6x16x32xbf16> to vector<1x4x16x32xbf16>
    %83 = vector.extract_strided_slice %40 {offsets = [5, 0], sizes = [1, 32], strides = [1, 1]} : vector<9x32xbf16> to vector<1x32xbf16>
    %84 = vector.shape_cast %83 : vector<1x32xbf16> to vector<32xbf16>
    %85 = vector.shape_cast %84 : vector<32xbf16> to vector<1x1x1x32xbf16>
    %86 = vector.broadcast %85 : vector<1x1x1x32xbf16> to vector<1x4x16x32xbf16>
    %87 = arith.mulf %82, %86 : vector<1x4x16x32xbf16>
    %88 = arith.extf %87 : vector<1x4x16x32xbf16> to vector<1x4x16x32xf32>
    %89 = arith.addf %81, %88 : vector<1x4x16x32xf32>
    %90 = vector.extract_strided_slice %37 {offsets = [0, 2, 0, 0], sizes = [1, 4, 16, 32], strides = [1, 1, 1, 1]} : vector<1x6x16x32xbf16> to vector<1x4x16x32xbf16>
    %91 = vector.extract_strided_slice %40 {offsets = [6, 0], sizes = [1, 32], strides = [1, 1]} : vector<9x32xbf16> to vector<1x32xbf16>
    %92 = vector.shape_cast %91 : vector<1x32xbf16> to vector<32xbf16>
    %93 = vector.shape_cast %92 : vector<32xbf16> to vector<1x1x1x32xbf16>
    %94 = vector.broadcast %93 : vector<1x1x1x32xbf16> to vector<1x4x16x32xbf16>
    %95 = arith.mulf %90, %94 : vector<1x4x16x32xbf16>
    %96 = arith.extf %95 : vector<1x4x16x32xbf16> to vector<1x4x16x32xf32>
    %97 = arith.addf %89, %96 : vector<1x4x16x32xf32>
    %98 = vector.extract_strided_slice %34 {offsets = [0, 2, 0, 0], sizes = [1, 4, 16, 32], strides = [1, 1, 1, 1]} : vector<1x6x16x32xbf16> to vector<1x4x16x32xbf16>
    %99 = vector.extract_strided_slice %40 {offsets = [7, 0], sizes = [1, 32], strides = [1, 1]} : vector<9x32xbf16> to vector<1x32xbf16>
    %100 = vector.shape_cast %99 : vector<1x32xbf16> to vector<32xbf16>
    %101 = vector.shape_cast %100 : vector<32xbf16> to vector<1x1x1x32xbf16>
    %102 = vector.broadcast %101 : vector<1x1x1x32xbf16> to vector<1x4x16x32xbf16>
    %103 = arith.mulf %98, %102 : vector<1x4x16x32xbf16>
    %104 = arith.extf %103 : vector<1x4x16x32xbf16> to vector<1x4x16x32xf32>
    %105 = arith.addf %97, %104 : vector<1x4x16x32xf32>
    %106 = vector.extract_strided_slice %39 {offsets = [0, 2, 0, 0], sizes = [1, 4, 16, 32], strides = [1, 1, 1, 1]} : vector<1x6x16x32xbf16> to vector<1x4x16x32xbf16>
    %107 = vector.extract_strided_slice %40 {offsets = [8, 0], sizes = [1, 32], strides = [1, 1]} : vector<9x32xbf16> to vector<1x32xbf16>
    %108 = vector.shape_cast %107 : vector<1x32xbf16> to vector<32xbf16>
    %109 = vector.shape_cast %108 : vector<32xbf16> to vector<1x1x1x32xbf16>
    %110 = vector.broadcast %109 : vector<1x1x1x32xbf16> to vector<1x4x16x32xbf16>
    %111 = arith.mulf %106, %110 : vector<1x4x16x32xbf16>
    %112 = arith.extf %111 : vector<1x4x16x32xbf16> to vector<1x4x16x32xf32>
    %113 = arith.addf %105, %112 : vector<1x4x16x32xf32>
    %114 = vector.shape_cast %113 : vector<1x4x16x32xf32> to vector<64x32xf32>
    %c0_21 = arith.constant 0 : index
    %c0_22 = arith.constant 0 : index
    %115 = vector.load %arg8[%c0_21, %c0_22] : memref<1x32xf32, #tpu.memory_space<vmem>>, vector<1x32xf32>
    %116 = vector.broadcast %115 : vector<1x32xf32> to vector<64x32xf32>
    %117 = arith.addf %114, %116 : vector<64x32xf32>
    %cst_23 = arith.constant 0.000000e+00 : f32
    %118 = vector.broadcast %cst_23 : f32 to vector<64x32xf32>
    %119 = arith.subf %118, %117 : vector<64x32xf32>
    %120 = math.exp %119 : vector<64x32xf32>
    %cst_24 = arith.constant 1.000000e+00 : f32
    %121 = vector.broadcast %cst_24 : f32 to vector<64x32xf32>
    %122 = arith.addf %121, %120 : vector<64x32xf32>
    %123 = tpu.reciprocal %122 {approx = true} : vector<64x32xf32> -> vector<64x32xf32>
    %124 = arith.mulf %117, %123 : vector<64x32xf32>
    %125 = arith.truncf %124 : vector<64x32xf32> to vector<64x32xbf16>
    %c0_25 = arith.constant 0 : index
    %c0_26 = arith.constant 0 : index
    %126 = vector.load %arg9[%c0_25, %c0_26] : memref<32x8xbf16, #tpu.memory_space<vmem>>, vector<32x8xbf16>
    %cst_27 = arith.constant dense<0.000000e+00> : vector<64x8xf32>
    %127 = tpu.matmul %125, %126, %cst_27 {dimension_numbers = #tpu.dot_dimension_numbers<[1], [0], [0], [1], [0, 0, 1, 1], [], []>} : vector<64x32xbf16>, vector<32x8xbf16>, vector<64x8xf32> -> vector<64x8xf32>
    %c0_28 = arith.constant 0 : index
    %c0_29 = arith.constant 0 : index
    %128 = vector.load %arg10[%c0_28, %c0_29] : memref<1x8xf32, #tpu.memory_space<vmem>>, vector<1x8xf32>
    %129 = vector.broadcast %128 : vector<1x8xf32> to vector<64x8xf32>
    %130 = arith.addf %127, %129 : vector<64x8xf32>
    %131 = vector.extract_strided_slice %3 {offsets = [0, 1, 0, 0], sizes = [1, 4, 16, 8], strides = [1, 1, 1, 1]} : vector<1x6x16x8xbf16> to vector<1x4x16x8xbf16>
    %132 = arith.extf %131 : vector<1x4x16x8xbf16> to vector<1x4x16x8xf32>
    %133 = vector.shape_cast %132 : vector<1x4x16x8xf32> to vector<64x8xf32>
    %134 = arith.addf %130, %133 : vector<64x8xf32>
    %135 = vector.shape_cast %134 : vector<64x8xf32> to vector<1x4x16x8xf32>
    %c0_30 = arith.constant 0 : index
    %c0_31 = arith.constant 0 : index
    %c0_32 = arith.constant 0 : index
    %c0_33 = arith.constant 0 : index
    %136 = vector.load %arg11[%c0_30, %c0_31, %c0_32, %c0_33] : memref<1x4x16x8xf32, #tpu.memory_space<vmem>>, vector<1x4x16x8xf32>
    tpu.vector_store %arg11[%c0_30, %c0_31, %c0_32, %c0_33], %135 {strides = array<i32>} : memref<1x4x16x8xf32, #tpu.memory_space<vmem>>, vector<1x4x16x8xf32>,
    return
  }
  func.func @transform_0(%arg0: i32, %arg1: i32) -> (i32, i32, i32, i32) {
    %c0_i32 = arith.constant 0 : i32
    %c0_i32_0 = arith.constant 0 : i32
    %c0_i32_1 = arith.constant 0 : i32
    return %arg0, %arg1, %c0_i32, %c0_i32_0 : i32, i32, i32, i32
  }
  func.func @transform_1(%arg0: i32, %arg1: i32) -> (i32, i32, i32, i32) {
    %c4_i32 = arith.constant 4 : i32
    %0 = arith.muli %arg1, %c4_i32 : i32
    %c1_i32 = arith.constant 1 : i32
    %1 = arith.subi %0, %c1_i32 : i32
    %c0_i32 = arith.constant 0 : i32
    %2 = arith.maxsi %1, %c0_i32 : i32
    %c0_i32_0 = arith.constant 0 : i32
    %c0_i32_1 = arith.constant 0 : i32
    %c0_i32_2 = arith.constant 0 : i32
    return %arg0, %2, %c0_i32_0, %c0_i32_1 : i32, i32, i32, i32
  }
  func.func @transform_2(%arg0: i32, %arg1: i32) -> (i32, i32, i32, i32) {
    %c1_i32 = arith.constant 1 : i32
    %0 = arith.addi %arg1, %c1_i32 : i32
    %c4_i32 = arith.constant 4 : i32
    %1 = arith.muli %0, %c4_i32 : i32
    %c15_i32 = arith.constant 15 : i32
    %2 = arith.minsi %1, %c15_i32 : i32
    %c0_i32 = arith.constant 0 : i32
    %c0_i32_0 = arith.constant 0 : i32
    %c0_i32_1 = arith.constant 0 : i32
    return %arg0, %2, %c0_i32, %c0_i32_0 : i32, i32, i32, i32
  }
  func.func @transform_3(%arg0: i32, %arg1: i32) -> (i32, i32) {
    %c0_i32 = arith.constant 0 : i32
    %c0_i32_0 = arith.constant 0 : i32
    %c0_i32_1 = arith.constant 0 : i32
    return %c0_i32, %c0_i32_0 : i32, i32
  }
  func.func @transform_4(%arg0: i32, %arg1: i32) -> (i32, i32) {
    %c0_i32 = arith.constant 0 : i32
    %c0_i32_0 = arith.constant 0 : i32
    %c0_i32_1 = arith.constant 0 : i32
    return %c0_i32, %c0_i32_0 : i32, i32
  }
  func.func @transform_5(%arg0: i32, %arg1: i32) -> (i32, i32) {
    %c0_i32 = arith.constant 0 : i32
    %c0_i32_0 = arith.constant 0 : i32
    %c0_i32_1 = arith.constant 0 : i32
    return %c0_i32, %c0_i32_0 : i32, i32
  }
  func.func @transform_6(%arg0: i32, %arg1: i32) -> (i32, i32) {
    %c0_i32 = arith.constant 0 : i32
    %c0_i32_0 = arith.constant 0 : i32
    %c0_i32_1 = arith.constant 0 : i32
    return %c0_i32, %c0_i32_0 : i32, i32
  }
  func.func @transform_7(%arg0: i32, %arg1: i32) -> (i32, i32) {
    %c0_i32 = arith.constant 0 : i32
    %c0_i32_0 = arith.constant 0 : i32
    %c0_i32_1 = arith.constant 0 : i32
    return %c0_i32, %c0_i32_0 : i32, i32
  }
  func.func @transform_8(%arg0: i32, %arg1: i32) -> (i32, i32) {
    %c0_i32 = arith.constant 0 : i32
    %c0_i32_0 = arith.constant 0 : i32
    %c0_i32_1 = arith.constant 0 : i32
    return %c0_i32, %c0_i32_0 : i32, i32
  }
  func.func @transform_9(%arg0: i32, %arg1: i32) -> (i32, i32, i32, i32) {
    %c0_i32 = arith.constant 0 : i32
    %c0_i32_0 = arith.constant 0 : i32
    %c0_i32_1 = arith.constant 0 : i32
    return %arg0, %arg1, %c0_i32, %c0_i32_0 : i32, i32, i32, i32
  }
}

</mosaic_0001>

<llo_original>
// kernel: tpu_custom_call.1
$region0: #{tpu_custom_call.1}
  #allocation0 [shape = 'u32[]', space=smem, size = 0x4, offset = 0x4, fixed_abs, tag = 'smem constant byte address 0x4 - core index']
  #allocation1 [shape = 'u32[72,128]{1,0:T(1,128)}', space=vmem, size = 0x9000, scoped, tag = 'internal scratch']
  %s0 = inlined_call_operand.vmem [shape: bf16[2,16,16,8], index: 0, kind: input, shape index: {}]
  %s1 = inlined_call_operand.vmem [shape: bf16[2,16,16,8], index: 1, kind: input, shape index: {}]
  %s2 = inlined_call_operand.vmem [shape: bf16[2,16,16,8], index: 2, kind: input, shape index: {}]
  %s3 = inlined_call_operand.vmem [shape: bf16[8,32], index: 3, kind: input, shape index: {}]
  %s4 = inlined_call_operand.vmem [shape: f32[1,32], index: 4, kind: input, shape index: {}]
  %s5 = inlined_call_operand.vmem [shape: bf16[9,32], index: 5, kind: input, shape index: {}]
  %s6 = inlined_call_operand.vmem [shape: f32[1,32], index: 6, kind: input, shape index: {}]
  %s7 = inlined_call_operand.vmem [shape: bf16[32,8], index: 7, kind: input, shape index: {}]
  %s8 = inlined_call_operand.vmem [shape: f32[1,8], index: 8, kind: input, shape index: {}]
  %s9 = inlined_call_operand.vmem [shape: f32[2,16,16,8], index: 9, kind: output, shape index: {}]
  %s10 = sld [smem:[#allocation0]]
  $region69: #{tpu_custom_call.1} parent=0
    _
  %s12 = ssub.s32 1, %s10
  %s13 = scalar_select 0, %s12, %s10
  loop: start=0, step=1, limit=10
  $region2: #{tpu_custom_call.1} parent=0 // loop_pre_header
    _
  $region3: #{tpu_custom_call.1} parent=0 // loop_header
    %s15 = sphi 0, %s19
    %p16 = scmp.ge.s32.totalorder %s15, 10
    %s22 = sphi 0, %s34
    %s23 = sphi 0, %s30
    %s24 = sphi 0, %s22
    %s25 = sphi 0, %s23
    %s26 = sphi 0, %s24
    %s27 = sphi 0, %s25
    %s39 = sphi 0, %s41
    %s42 = sphi 0, %s39
    %s43 = sphi 0, %s42
    %s59 = sphi 0, %s43
    %s75 = sphi 0, %s77
    %s78 = sphi 0, %s75
    %s79 = sphi 0, %s78
    %s95 = sphi 0, %s79
    %s111 = sphi 0, %s113
    %s114 = sphi 0, %s111
    %s115 = sphi 0, %s114
    %s131 = sphi 0, %s115
    %s135 = sphi 0, %s135
    %s137 = sphi 0, %s135
    %s138 = sphi 0, %s137
    %s152 = sphi 0, %s138
    %s156 = sphi 0, %s156
    %s158 = sphi 0, %s156
    %s159 = sphi 0, %s158
    %s173 = sphi 0, %s159
    %s177 = sphi 0, %s177
    %s179 = sphi 0, %s177
    %s180 = sphi 0, %s179
    %s194 = sphi 0, %s180
    %s198 = sphi 0, %s198
    %s200 = sphi 0, %s198
    %s201 = sphi 0, %s200
    %s215 = sphi 0, %s201
    %s219 = sphi 0, %s219
    %s221 = sphi 0, %s219
    %s222 = sphi 0, %s221
    %s236 = sphi 0, %s222
    %s240 = sphi 0, %s240
    %s242 = sphi 0, %s240
    %s243 = sphi 0, %s242
    %s257 = sphi 0, %s243
    %s265 = sphi 0, %s267
    %s268 = sphi 0, %s265
    %s269 = sphi 0, %s268
    %s285 = sphi 0, %s269
  $region4: #{tpu_custom_call.1} parent=0 // loop_header_branch
    %18 = sbr.rel (%p16) target = $region8
  $region5: #{tpu_custom_call.1} parent=0 // loop_body
    %s20 = ssub.s32 %s15, 1
    %s21 = ssub.s32 %s15, 2
    %s28 = sadd.s32 1, %s23
    %p29 = scmp.ge.s32.totalorder %s28, 4
    %s30 = scalar_select %p29, 0, %s28
    %s31 = sadd.s32 1, %s22
    %s32 = scalar_select %p29, %s31, %s22
    %p33 = scmp.ge.s32.totalorder %s32, 2
    %s34 = scalar_select %p33, 0, %s32
    %s35 = ssub.s32 %s22, %s34
    %s36 = ssub.s32 %s23, %s30
    %s37 = sor.u32 %s35, %s36
    %p38 = scmp.eq.s32.totalorder %s37, 0
    %s40 = sadd.s32 %s39, 1
    %s41 = scalar_select %p38, %s39, %s40
    %p44 = pneg %p38
    %p45 = scmp.eq.s32.totalorder %s15, 7
    %p46 = por %p44, %p45
    %p47 = scmp.ne.s32.totalorder %s39, %s42
    %p48 = scmp.eq.s32.totalorder %s15, 0
    %p49 = por %p47, %p48
    %p50 = scmp.ne.s32.totalorder %s39, %s42
    %p51 = scmp.eq.s32.totalorder %s20, 7
    %p52 = por %p50, %p51
    %p53 = scmp.ne.s32.totalorder %s42, %s43
    %p54 = scmp.eq.s32.totalorder %s20, 0
    %p55 = por %p53, %p54
    %p56 = scmp.ne.s32.totalorder %s42, %s43
    %p57 = scmp.eq.s32.totalorder %s21, 7
    %p58 = por %p56, %p57
    %p60 = scmp.ne.s32.totalorder %s43, %s59
    %p61 = scmp.eq.s32.totalorder %s21, 0
    %p62 = por %p60, %p61
    %s63 = smul.u32 %s23, 4
    %s64 = ssub.s32 %s63, 1
    %p65 = scmp.gt.s32.totalorder %s64, 0
    %s66 = scalar_select %p65, %s64, 0
    %s67 = smul.u32 %s30, 4
    %s68 = ssub.s32 %s67, 1
    %p69 = scmp.gt.s32.totalorder %s68, 0
    %s70 = scalar_select %p69, %s68, 0
    %s71 = ssub.s32 %s22, %s34
    %s72 = ssub.s32 %s66, %s70
    %s73 = sor.u32 %s71, %s72
    %p74 = scmp.eq.s32.totalorder %s73, 0
    %s76 = sadd.s32 %s75, 1
    %s77 = scalar_select %p74, %s75, %s76
    %p80 = pneg %p74
    %p81 = scmp.eq.s32.totalorder %s15, 7
    %p82 = por %p80, %p81
    %p83 = scmp.ne.s32.totalorder %s75, %s78
    %p84 = scmp.eq.s32.totalorder %s15, 0
    %p85 = por %p83, %p84
    %p86 = scmp.ne.s32.totalorder %s75, %s78
    %p87 = scmp.eq.s32.totalorder %s20, 7
    %p88 = por %p86, %p87
    %p89 = scmp.ne.s32.totalorder %s78, %s79
    %p90 = scmp.eq.s32.totalorder %s20, 0
    %p91 = por %p89, %p90
    %p92 = scmp.ne.s32.totalorder %s78, %s79
    %p93 = scmp.eq.s32.totalorder %s21, 7
    %p94 = por %p92, %p93
    %p96 = scmp.ne.s32.totalorder %s79, %s95
    %p97 = scmp.eq.s32.totalorder %s21, 0
    %p98 = por %p96, %p97
    %s99 = sadd.s32 %s23, 1
    %s100 = smul.u32 %s99, 4
    %p101 = scmp.lt.s32.totalorder %s100, 15
    %s102 = scalar_select %p101, %s100, 15
    %s103 = sadd.s32 %s30, 1
    %s104 = smul.u32 %s103, 4
    %p105 = scmp.lt.s32.totalorder %s104, 15
    %s106 = scalar_select %p105, %s104, 15
    %s107 = ssub.s32 %s22, %s34
    %s108 = ssub.s32 %s102, %s106
    %s109 = sor.u32 %s107, %s108
    %p110 = scmp.eq.s32.totalorder %s109, 0
    %s112 = sadd.s32 %s111, 1
    %s113 = scalar_select %p110, %s111, %s112
    %p116 = pneg %p110
    %p117 = scmp.eq.s32.totalorder %s15, 7
    %p118 = por %p116, %p117
    %p119 = scmp.ne.s32.totalorder %s111, %s114
    %p120 = scmp.eq.s32.totalorder %s15, 0
    %p121 = por %p119, %p120
    %p122 = scmp.ne.s32.totalorder %s111, %s114
    %p123 = scmp.eq.s32.totalorder %s20, 7
    %p124 = por %p122, %p123
    %p125 = scmp.ne.s32.totalorder %s114, %s115
    %p126 = scmp.eq.s32.totalorder %s20, 0
    %p127 = por %p125, %p126
    %p128 = scmp.ne.s32.totalorder %s114, %s115
    %p129 = scmp.eq.s32.totalorder %s21, 7
    %p130 = por %p128, %p129
    %p132 = scmp.ne.s32.totalorder %s115, %s131
    %p133 = scmp.eq.s32.totalorder %s21, 0
    %p134 = por %p132, %p133
    %s136 = sadd.s32 %s135, 1
    %p139 = scmp.eq.s32.totalorder %s15, 7
    %p140 = scmp.ne.s32.totalorder %s135, %s137
    %p141 = scmp.eq.s32.totalorder %s15, 0
    %p142 = por %p140, %p141
    %p143 = scmp.ne.s32.totalorder %s135, %s137
    %p144 = scmp.eq.s32.totalorder %s20, 7
    %p145 = por %p143, %p144
    %p146 = scmp.ne.s32.totalorder %s137, %s138
    %p147 = scmp.eq.s32.totalorder %s20, 0
    %p148 = por %p146, %p147
    %p149 = scmp.ne.s32.totalorder %s137, %s138
    %p150 = scmp.eq.s32.totalorder %s21, 7
    %p151 = por %p149, %p150
    %p153 = scmp.ne.s32.totalorder %s138, %s152
    %p154 = scmp.eq.s32.totalorder %s21, 0
    %p155 = por %p153, %p154
    %s157 = sadd.s32 %s156, 1
    %p160 = scmp.eq.s32.totalorder %s15, 7
    %p161 = scmp.ne.s32.totalorder %s156, %s158
    %p162 = scmp.eq.s32.totalorder %s15, 0
    %p163 = por %p161, %p162
    %p164 = scmp.ne.s32.totalorder %s156, %s158
    %p165 = scmp.eq.s32.totalorder %s20, 7
    %p166 = por %p164, %p165
    %p167 = scmp.ne.s32.totalorder %s158, %s159
    %p168 = scmp.eq.s32.totalorder %s20, 0
    %p169 = por %p167, %p168
    %p170 = scmp.ne.s32.totalorder %s158, %s159
    %p171 = scmp.eq.s32.totalorder %s21, 7
    %p172 = por %p170, %p171
    %p174 = scmp.ne.s32.totalorder %s159, %s173
    %p175 = scmp.eq.s32.totalorder %s21, 0
    %p176 = por %p174, %p175
    %s178 = sadd.s32 %s177, 1
    %p181 = scmp.eq.s32.totalorder %s15, 7
    %p182 = scmp.ne.s32.totalorder %s177, %s179
    %p183 = scmp.eq.s32.totalorder %s15, 0
    %p184 = por %p182, %p183
    %p185 = scmp.ne.s32.totalorder %s177, %s179
    %p186 = scmp.eq.s32.totalorder %s20, 7
    %p187 = por %p185, %p186
    %p188 = scmp.ne.s32.totalorder %s179, %s180
    %p189 = scmp.eq.s32.totalorder %s20, 0
    %p190 = por %p188, %p189
    %p191 = scmp.ne.s32.totalorder %s179, %s180
    %p192 = scmp.eq.s32.totalorder %s21, 7
    %p193 = por %p191, %p192
    %p195 = scmp.ne.s32.totalorder %s180, %s194
    %p196 = scmp.eq.s32.totalorder %s21, 0
    %p197 = por %p195, %p196
    %s199 = sadd.s32 %s198, 1
    %p202 = scmp.eq.s32.totalorder %s15, 7
    %p203 = scmp.ne.s32.totalorder %s198, %s200
    %p204 = scmp.eq.s32.totalorder %s15, 0
    %p205 = por %p203, %p204
    %p206 = scmp.ne.s32.totalorder %s198, %s200
    %p207 = scmp.eq.s32.totalorder %s20, 7
    %p208 = por %p206, %p207
    %p209 = scmp.ne.s32.totalorder %s200, %s201
    %p210 = scmp.eq.s32.totalorder %s20, 0
    %p211 = por %p209, %p210
    %p212 = scmp.ne.s32.totalorder %s200, %s201
    %p213 = scmp.eq.s32.totalorder %s21, 7
    %p214 = por %p212, %p213
    %p216 = scmp.ne.s32.totalorder %s201, %s215
    %p217 = scmp.eq.s32.totalorder %s21, 0
    %p218 = por %p216, %p217
    %s220 = sadd.s32 %s219, 1
    %p223 = scmp.eq.s32.totalorder %s15, 7
    %p224 = scmp.ne.s32.totalorder %s219, %s221
    %p225 = scmp.eq.s32.totalorder %s15, 0
    %p226 = por %p224, %p225
    %p227 = scmp.ne.s32.totalorder %s219, %s221
    %p228 = scmp.eq.s32.totalorder %s20, 7
    %p229 = por %p227, %p228
    %p230 = scmp.ne.s32.totalorder %s221, %s222
    %p231 = scmp.eq.s32.totalorder %s20, 0
    %p232 = por %p230, %p231
    %p233 = scmp.ne.s32.totalorder %s221, %s222
    %p234 = scmp.eq.s32.totalorder %s21, 7
    %p235 = por %p233, %p234
    %p237 = scmp.ne.s32.totalorder %s222, %s236
    %p238 = scmp.eq.s32.totalorder %s21, 0
    %p239 = por %p237, %p238
    %s241 = sadd.s32 %s240, 1
    %p244 = scmp.eq.s32.totalorder %s15, 7
    %p245 = scmp.ne.s32.totalorder %s240, %s242
    %p246 = scmp.eq.s32.totalorder %s15, 0
    %p247 = por %p245, %p246
    %p248 = scmp.ne.s32.totalorder %s240, %s242
    %p249 = scmp.eq.s32.totalorder %s20, 7
    %p250 = por %p248, %p249
    %p251 = scmp.ne.s32.totalorder %s242, %s243
    %p252 = scmp.eq.s32.totalorder %s20, 0
    %p253 = por %p251, %p252
    %p254 = scmp.ne.s32.totalorder %s242, %s243
    %p255 = scmp.eq.s32.totalorder %s21, 7
    %p256 = por %p254, %p255
    %p258 = scmp.ne.s32.totalorder %s243, %s257
    %p259 = scmp.eq.s32.totalorder %s21, 0
    %p260 = por %p258, %p259
    %s261 = ssub.s32 %s22, %s34
    %s262 = ssub.s32 %s23, %s30
    %s263 = sor.u32 %s261, %s262
    %p264 = scmp.eq.s32.totalorder %s263, 0
    %s266 = sadd.s32 %s265, 1
    %s267 = scalar_select %p264, %s265, %s266
    %p270 = pneg %p264
    %p271 = scmp.eq.s32.totalorder %s15, 7
    %p272 = por %p270, %p271
    %p273 = scmp.ne.s32.totalorder %s265, %s268
    %p274 = scmp.eq.s32.totalorder %s15, 0
    %p275 = por %p273, %p274
    %p276 = scmp.ne.s32.totalorder %s265, %s268
    %p277 = scmp.eq.s32.totalorder %s20, 7
    %p278 = por %p276, %p277
    %p279 = scmp.ne.s32.totalorder %s268, %s269
    %p280 = scmp.eq.s32.totalorder %s20, 0
    %p281 = por %p279, %p280
    %p282 = scmp.ne.s32.totalorder %s268, %s269
    %p283 = scmp.eq.s32.totalorder %s21, 7
    %p284 = por %p282, %p283
    %p286 = scmp.ne.s32.totalorder %s269, %s285
    %p287 = scmp.eq.s32.totalorder %s21, 0
    %p288 = por %p286, %p287
    %p289 = scmp.le.s32.totalorder 1, %s15
    %p290 = scmp.lt.s32.totalorder %s15, 9
    %p291 = pnand %p289, %p290
    %p292 = pneg %p291
    // Predicated region
    $region9: #{tpu_custom_call.1} parent=5 // pred_check
      _
    $region10: #{tpu_custom_call.1} parent=5 // pred_check_branch
      %294 = sbr.rel (%p291) target = $region12
    $region11: #{tpu_custom_call.1} parent=5 // pred_region
      %s295 = ssub.s32 %s15, 1
      // Predicated region
      $region13: #{tpu_custom_call.1} parent=11 // pred_check
        %p296 = pneg %p148
      $region14: #{tpu_custom_call.1} parent=11 // pred_check_branch
        %298 = sbr.rel (%p296) target = $region16
      $region15: #{tpu_custom_call.1} parent=11 // pred_region
        _
      $region16: #{tpu_custom_call.1} parent=11 // pred_fallthru
        _
      // Predicated region
      $region17: #{tpu_custom_call.1} parent=11 // pred_check
        %p299 = pneg %p169
      $region18: #{tpu_custom_call.1} parent=11 // pred_check_branch
        %301 = sbr.rel (%p299) target = $region20
      $region19: #{tpu_custom_call.1} parent=11 // pred_region
        _
      $region20: #{tpu_custom_call.1} parent=11 // pred_fallthru
        _
      // Predicated region
      $region21: #{tpu_custom_call.1} parent=11 // pred_check
        %p302 = pneg %p190
      $region22: #{tpu_custom_call.1} parent=11 // pred_check_branch
        %304 = sbr.rel (%p302) target = $region24
      $region23: #{tpu_custom_call.1} parent=11 // pred_region
        _
      $region24: #{tpu_custom_call.1} parent=11 // pred_fallthru
        _
      // Predicated region
      $region25: #{tpu_custom_call.1} parent=11 // pred_check
        %p305 = pneg %p211
      $region26: #{tpu_custom_call.1} parent=11 // pred_check_branch
        %307 = sbr.rel (%p305) target = $region28
      $region27: #{tpu_custom_call.1} parent=11 // pred_region
        _
      $region28: #{tpu_custom_call.1} parent=11 // pred_fallthru
        _
      // Predicated region
      $region29: #{tpu_custom_call.1} parent=11 // pred_check
        %p308 = pneg %p232
      $region30: #{tpu_custom_call.1} parent=11 // pred_check_branch
        %310 = sbr.rel (%p308) target = $region32
      $region31: #{tpu_custom_call.1} parent=11 // pred_region
        _
      $region32: #{tpu_custom_call.1} parent=11 // pred_fallthru
        _
      // Predicated region
      $region33: #{tpu_custom_call.1} parent=11 // pred_check
        %p311 = pneg %p253
      $region34: #{tpu_custom_call.1} parent=11 // pred_check_branch
        %313 = sbr.rel (%p311) target = $region36
      $region35: #{tpu_custom_call.1} parent=11 // pred_region
        _
      $region36: #{tpu_custom_call.1} parent=11 // pred_fallthru
        _
    $region12: #{tpu_custom_call.1} parent=5 // pred_fallthru
      _
    %p314 = scmp.lt.s32.totalorder %s15, 8
    // Predicated region
    $region37: #{tpu_custom_call.1} parent=5 // pred_check
      %p315 = pneg %p314
    $region38: #{tpu_custom_call.1} parent=5 // pred_check_branch
      %317 = sbr.rel (%p315) target = $region40
    $region39: #{tpu_custom_call.1} parent=5 // pred_region
      // Predicated region
      $region41: #{tpu_custom_call.1} parent=39 // pred_check
        %p318 = pneg %p49
      $region42: #{tpu_custom_call.1} parent=39 // pred_check_branch
        %320 = sbr.rel (%p318) target = $region44
      $region43: #{tpu_custom_call.1} parent=39 // pred_region
        %s321 = smul.u32 4, %s23
        %p322 = scmp.lt.s32.totalorder %s22, 1
        %s323 = scalar_select %p322, %s22, 1
        %p324 = scmp.lt.s32.totalorder %s321, 15
        %s325 = scalar_select %p324, %s321, 15
        %s326 = smul.addr %s325, 2
        %s327 = smul.addr %s323, 32
        %s328 = sadd.s32 %s326, %s327
        %s329 = smul.addr %s328, 4
        %s330 = scalar_lea.vmem %s0, %s329
        %s331 = smul.u32 4, %s23
      $region44: #{tpu_custom_call.1} parent=39 // pred_fallthru
        _
      // Predicated region
      $region45: #{tpu_custom_call.1} parent=39 // pred_check
        %p332 = pneg %p85
      $region46: #{tpu_custom_call.1} parent=39 // pred_check_branch
        %334 = sbr.rel (%p332) target = $region48
      $region47: #{tpu_custom_call.1} parent=39 // pred_region
        %s335 = smul.u32 %s23, 4
        %s336 = ssub.s32 %s335, 1
        %p337 = scmp.gt.s32.totalorder %s336, 0
        %s338 = scalar_select %p337, %s336, 0
        %p339 = scmp.lt.s32.totalorder %s22, 1
        %s340 = scalar_select %p339, %s22, 1
        %p341 = scmp.lt.s32.totalorder %s338, 15
        %s342 = scalar_select %p341, %s338, 15
        %s343 = smul.addr %s342, 2
        %s344 = smul.addr %s340, 32
        %s345 = sadd.s32 %s343, %s344
        %s346 = smul.addr %s345, 4
        %s347 = scalar_lea.vmem %s1, %s346
        %s348 = smul.u32 %s23, 4
        %s349 = ssub.s32 %s348, 1
        %p350 = scmp.gt.s32.totalorder %s349, 0
        %s351 = scalar_select %p350, %s349, 0
      $region48: #{tpu_custom_call.1} parent=39 // pred_fallthru
        _
      // Predicated region
      $region49: #{tpu_custom_call.1} parent=39 // pred_check
        %p352 = pneg %p121
      $region50: #{tpu_custom_call.1} parent=39 // pred_check_branch
        %354 = sbr.rel (%p352) target = $region52
      $region51: #{tpu_custom_call.1} parent=39 // pred_region
        %s355 = sadd.s32 %s23, 1
        %s356 = smul.u32 %s355, 4
        %p357 = scmp.lt.s32.totalorder %s356, 15
        %s358 = scalar_select %p357, %s356, 15
        %p359 = scmp.lt.s32.totalorder %s22, 1
        %s360 = scalar_select %p359, %s22, 1
        %p361 = scmp.lt.s32.totalorder %s358, 15
        %s362 = scalar_select %p361, %s358, 15
        %s363 = smul.addr %s362, 2
        %s364 = smul.addr %s360, 32
        %s365 = sadd.s32 %s363, %s364
        %s366 = smul.addr %s365, 4
        %s367 = scalar_lea.vmem %s2, %s366
        %s368 = sadd.s32 %s23, 1
        %s369 = smul.u32 %s368, 4
        %p370 = scmp.lt.s32.totalorder %s369, 15
        %s371 = scalar_select %p370, %s369, 15
      $region52: #{tpu_custom_call.1} parent=39 // pred_fallthru
        _
    $region40: #{tpu_custom_call.1} parent=5 // pred_fallthru
      _
    %p372 = scmp.le.s32.totalorder 1, %s15
    %p373 = scmp.lt.s32.totalorder %s15, 9
    %p374 = pnand %p372, %p373
    %p375 = pneg %p374
    // Predicated region
    $region53: #{tpu_custom_call.1} parent=5 // pred_check
      _
    $region54: #{tpu_custom_call.1} parent=5 // pred_check_branch
      %377 = sbr.rel (%p374) target = $region56
    $region55: #{tpu_custom_call.1} parent=5 // pred_region
      %s378 = ssub.s32 %s15, 1
      %s379 = smul.u32 4, %s25
      %p380 = scmp.lt.s32.totalorder %s24, 1
      %s381 = scalar_select %p380, %s24, 1
      %p382 = scmp.lt.s32.totalorder %s379, 15
      %s383 = scalar_select %p382, %s379, 15
      %s384 = smul.addr %s383, 2
      %s385 = smul.addr %s381, 32
      %s386 = sadd.s32 %s384, %s385
      %s387 = smul.addr %s386, 4
      %s388 = scalar_lea.vmem %s0, %s387
      %p389 = pneg %p55
      %p390 = pneg %p52
      %s391 = smul.u32 %s25, 4
      %s392 = ssub.s32 %s391, 1
      %p393 = scmp.gt.s32.totalorder %s392, 0
      %s394 = scalar_select %p393, %s392, 0
      %p395 = scmp.lt.s32.totalorder %s24, 1
      %s396 = scalar_select %p395, %s24, 1
      %p397 = scmp.lt.s32.totalorder %s394, 15
      %s398 = scalar_select %p397, %s394, 15
      %s399 = smul.addr %s398, 2
      %s400 = smul.addr %s396, 32
      %s401 = sadd.s32 %s399, %s400
      %s402 = smul.addr %s401, 4
      %s403 = scalar_lea.vmem %s1, %s402
      %p404 = pneg %p91
      %p405 = pneg %p88
      %s406 = sadd.s32 %s25, 1
      %s407 = smul.u32 %s406, 4
      %p408 = scmp.lt.s32.totalorder %s407, 15
      %s409 = scalar_select %p408, %s407, 15
      %p410 = scmp.lt.s32.totalorder %s24, 1
      %s411 = scalar_select %p410, %s24, 1
      %p412 = scmp.lt.s32.totalorder %s409, 15
      %s413 = scalar_select %p412, %s409, 15
      %s414 = smul.addr %s413, 2
      %s415 = smul.addr %s411, 32
      %s416 = sadd.s32 %s414, %s415
      %s417 = smul.addr %s416, 4
      %s418 = scalar_lea.vmem %s2, %s417
      %p419 = pneg %p127
      %p420 = pneg %p124
      %p421 = pneg %p148
      %p422 = pneg %p145
      %p423 = pneg %p169
      %p424 = pneg %p166
      %p425 = pneg %p190
      %p426 = pneg %p187
      %p427 = pneg %p211
      %p428 = pneg %p208
      %p429 = pneg %p232
      %p430 = pneg %p229
      %p431 = pneg %p253
      %p432 = pneg %p250
      %p433 = pneg %p281
      %p434 = pneg %p278
      %s435 = smul.u32 4, %s25
      %p436 = scmp.lt.s32.totalorder %s24, 1
      %s437 = scalar_select %p436, %s24, 1
      %p438 = scmp.lt.s32.totalorder %s435, 15
      %s439 = scalar_select %p438, %s435, 15
      %s440 = smul.addr %s439, 2
      %s441 = smul.addr %s437, 32
      %s442 = sadd.s32 %s440, %s441
      %s443 = smul.addr %s442, 8
      %s444 = scalar_lea.vmem %s9, %s443
      %s445 = smul.u32 4, %s25
      %p446 = scmp.lt.s32.totalorder %s24, 1
      %s447 = scalar_select %p446, %s24, 1
      %p448 = scmp.lt.s32.totalorder %s445, 15
      %s449 = scalar_select %p448, %s445, 15
      %s450 = smul.addr %s449, 2
      %s451 = smul.addr %s447, 32
      %s452 = sadd.s32 %s450, %s451
      %s453 = smul.addr %s452, 4
      %s454 = scalar_lea.vmem %s0, %s453
      %s455 = smul.u32 4, %s25
      %s456 = smul.u32 %s25, 4
      %s457 = ssub.s32 %s456, 1
      %p458 = scmp.gt.s32.totalorder %s457, 0
      %s459 = scalar_select %p458, %s457, 0
      %p460 = scmp.lt.s32.totalorder %s24, 1
      %s461 = scalar_select %p460, %s24, 1
      %p462 = scmp.lt.s32.totalorder %s459, 15
      %s463 = scalar_select %p462, %s459, 15
      %s464 = smul.addr %s463, 2
      %s465 = smul.addr %s461, 32
      %s466 = sadd.s32 %s464, %s465
      %s467 = smul.addr %s466, 4
      %s468 = scalar_lea.vmem %s1, %s467
      %s469 = smul.u32 %s25, 4
      %s470 = ssub.s32 %s469, 1
      %p471 = scmp.gt.s32.totalorder %s470, 0
      %s472 = scalar_select %p471, %s470, 0
      %s473 = sadd.s32 %s25, 1
      %s474 = smul.u32 %s473, 4
      %p475 = scmp.lt.s32.totalorder %s474, 15
      %s476 = scalar_select %p475, %s474, 15
      %p477 = scmp.lt.s32.totalorder %s24, 1
      %s478 = scalar_select %p477, %s24, 1
      %p479 = scmp.lt.s32.totalorder %s476, 15
      %s480 = scalar_select %p479, %s476, 15
      %s481 = smul.addr %s480, 2
      %s482 = smul.addr %s478, 32
      %s483 = sadd.s32 %s481, %s482
      %s484 = smul.addr %s483, 4
      %s485 = scalar_lea.vmem %s2, %s484
      %s486 = sadd.s32 %s25, 1
      %s487 = smul.u32 %s486, 4
      %p488 = scmp.lt.s32.totalorder %s487, 15
      %s489 = scalar_select %p488, %s487, 15
      %s490 = smul.u32 4, %s25
      %p491 = scmp.lt.s32.totalorder %s24, 1
      %s492 = scalar_select %p491, %s24, 1
      %p493 = scmp.lt.s32.totalorder %s490, 15
      %s494 = scalar_select %p493, %s490, 15
      %s495 = smul.addr %s494, 2
      %s496 = smul.addr %s492, 32
      %s497 = sadd.s32 %s495, %s496
      %s498 = smul.addr %s497, 8
      %s499 = scalar_lea.vmem %s9, %s498
      %s500 = smul.u32 4, %s25
      %v502 = vld [vmem:[%s468] sm:$0xf]
      %v503 = vld [vmem:[%s468 + $0x4] sm:$0xf]
      %v504 = vld [vmem:[%s454] sm:$0xf]
      %v505 = vld [vmem:[%s454 + $0x4] sm:$0xf]
      %v506 = vld [vmem:[%s454 + $0x8] sm:$0xf]
      %v507 = vld [vmem:[%s454 + $0xc] sm:$0xf]
      %v508 = vld [vmem:[%s454 + $0x10] sm:$0xf]
      %v509 = vld [vmem:[%s454 + $0x14] sm:$0xf]
      %v510 = vld [vmem:[%s454 + $0x18] sm:$0xf]
      %v511 = vld [vmem:[%s454 + $0x1c] sm:$0xf]
      %v512 = vld [vmem:[%s485] sm:$0xf]
      %v513 = vld [vmem:[%s485 + $0x4] sm:$0xf]
      %v514 = vld [vmem:[%s3] sm:$0xf]
      %v515 = vld [vmem:[%s4] sm:$0x1]
      %v517 = vperm.slane %v515, 0
      %v531 = vunpack.c.l.b16 %v502
      %v532 = vunpack.c.l.b16 %v503
      %v533 = vunpack.c.l.b16 %v504
      %v534 = vunpack.c.l.b16 %v505
      %v535 = vunpack.c.l.b16 %v506
      %v536 = vunpack.c.l.b16 %v507
      %v537 = vunpack.c.l.b16 %v508
      %v538 = vunpack.c.l.b16 %v509
      %v539 = vunpack.c.l.b16 %v510
      %v540 = vunpack.c.l.b16 %v511
      %v541 = vunpack.c.l.b16 %v512
      %v542 = vunpack.c.l.b16 %v513
      %v543 = vpack.c.b16 %v532, %v531
      %v544 = vpack.c.b16 %v534, %v533
      %v545 = vpack.c.b16 %v536, %v535
      %v546 = vpack.c.b16 %v538, %v537
      %v547 = vpack.c.b16 %v540, %v539
      %v548 = vpack.c.b16 %v542, %v541
      %vm549 = vcmask 64512
      %v551 = vsel %vm549, %v543, 0
      %v554 = vsel %vm549, %v544, 0
      %v557 = vsel %vm549, %v545, 0
      %v560 = vsel %vm549, %v546, 0
      %v563 = vsel %vm549, %v547, 0
      %v566 = vsel %vm549, %v548, 0
      %vm568 = vcmask 1043456
      %v570 = vsel %vm568, %v514, 0
      %572 = vmatpush.bf16.msra.mxu0 0
      %573 = vmatpush.bf16.msra.mxu0 0
      %574 = vmatpush.bf16.msra.mxu0 0
      %575 = vmatpush.bf16.msra.mxu0 0
      %576 = vmatpush.bf16.msra.mxu0 0
      %577 = vmatpush.bf16.msra.mxu0 0
      %578 = vmatpush.bf16.msra.mxu0 0
      %579 = vmatpush.bf16.msra.mxu0 %v570
      %580 = vmatmul.bf16.gmra.mxu0 %v551
      %v581 = vpop.f32.mrf.mxu0
      %v582 = vadd.f32 %v517, %v581
      %v583 = vpop.f32.mrf.mxu0
      %v584 = vadd.f32 %v517, %v583
      %585 = vmatmul.bf16.gmra.mxu0 %v554
      %v586 = vpop.f32.mrf.mxu0
      %v587 = vadd.f32 %v517, %v586
      %v588 = vpop.f32.mrf.mxu0
      %v589 = vadd.f32 %v517, %v588
      %590 = vmatmul.bf16.gmra.mxu0 %v557
      %v591 = vpop.f32.mrf.mxu0
      %v592 = vadd.f32 %v517, %v591
      %v593 = vpop.f32.mrf.mxu0
      %v594 = vadd.f32 %v517, %v593
      %595 = vmatmul.bf16.gmra.mxu0 %v560
      %v596 = vpop.f32.mrf.mxu0
      %v597 = vadd.f32 %v517, %v596
      %v598 = vpop.f32.mrf.mxu0
      %v599 = vadd.f32 %v517, %v598
      %600 = vmatmul.bf16.gmra.mxu0 %v563
      %v601 = vpop.f32.mrf.mxu0
      %v602 = vadd.f32 %v517, %v601
      %v603 = vpop.f32.mrf.mxu0
      %v604 = vadd.f32 %v517, %v603
      %605 = vmatmul.bf16.gmra.mxu0 %v566
      %v606 = vpop.f32.mrf.mxu0
      %v607 = vadd.f32 %v517, %v606
      %v608 = vpop.f32.mrf.mxu0
      %v609 = vadd.f32 %v517, %v608
      %610 = vdwg.mxu0
      %v611 = vsub.f32 0.0, %v582
      %v612 = vsub.f32 0.0, %v584
      %v613 = vsub.f32 0.0, %v587
      %v614 = vsub.f32 0.0, %v589
      %v615 = vsub.f32 0.0, %v592
      %v616 = vsub.f32 0.0, %v594
      %v617 = vsub.f32 0.0, %v597
      %v618 = vsub.f32 0.0, %v599
      %v619 = vsub.f32 0.0, %v602
      %v620 = vsub.f32 0.0, %v604
      %v621 = vsub.f32 0.0, %v607
      %v622 = vsub.f32 0.0, %v609
      %v623 = vmul.f32 %v611, 1.442695
      %v624 = vpow.pop %v623
      %v625 = vmul.f32 %v612, 1.442695
      %v626 = vpow.pop %v625
      %v627 = vmul.f32 %v613, 1.442695
      %v628 = vpow.pop %v627
      %v629 = vmul.f32 %v614, 1.442695
      %v630 = vpow.pop %v629
      %v631 = vmul.f32 %v615, 1.442695
      %v632 = vpow.pop %v631
      %v633 = vmul.f32 %v616, 1.442695
      %v634 = vpow.pop %v633
      %v635 = vmul.f32 %v617, 1.442695
      %v636 = vpow.pop %v635
      %v637 = vmul.f32 %v618, 1.442695
      %v638 = vpow.pop %v637
      %v639 = vmul.f32 %v619, 1.442695
      %v640 = vpow.pop %v639
      %v641 = vmul.f32 %v620, 1.442695
      %v642 = vpow.pop %v641
      %v643 = vmul.f32 %v621, 1.442695
      %v644 = vpow.pop %v643
      %v645 = vmul.f32 %v622, 1.442695
      %v646 = vpow.pop %v645
      %v647 = vadd.f32 %v624, 1.0
      %v648 = vadd.f32 %v626, 1.0
      %v649 = vadd.f32 %v628, 1.0
      %v650 = vadd.f32 %v630, 1.0
      %v651 = vadd.f32 %v632, 1.0
      %v652 = vadd.f32 %v634, 1.0
      %v653 = vadd.f32 %v636, 1.0
      %v654 = vadd.f32 %v638, 1.0
      %v655 = vadd.f32 %v640, 1.0
      %v656 = vadd.f32 %v642, 1.0
      %v657 = vadd.f32 %v644, 1.0
      %v658 = vadd.f32 %v646, 1.0
      %v659 = vrcp.pop %v647
      %v660 = vrcp.pop %v648
      %v661 = vrcp.pop %v649
      %v662 = vrcp.pop %v650
      %v663 = vrcp.pop %v651
      %v664 = vrcp.pop %v652
      %v665 = vrcp.pop %v653
      %v666 = vrcp.pop %v654
      %v667 = vrcp.pop %v655
      %v668 = vrcp.pop %v656
      %v669 = vrcp.pop %v657
      %v670 = vrcp.pop %v658
      %v671 = vmul.f32 %v582, %v659
      %v672 = vmul.f32 %v584, %v660
      %v673 = vmul.f32 %v587, %v661
      %v674 = vmul.f32 %v589, %v662
      %v675 = vmul.f32 %v592, %v663
      %v676 = vmul.f32 %v594, %v664
      %v677 = vmul.f32 %v597, %v665
      %v678 = vmul.f32 %v599, %v666
      %v679 = vmul.f32 %v602, %v667
      %v680 = vmul.f32 %v604, %v668
      %v681 = vmul.f32 %v607, %v669
      %v682 = vmul.f32 %v609, %v670
      %v683 = vpack.c.bf16 %v671, %v671
      %v684 = vpack.c.bf16 %v672, %v672
      %v685 = vpack.c.bf16 %v673, %v673
      %v686 = vpack.c.bf16 %v674, %v674
      %v687 = vpack.c.bf16 %v675, %v675
      %v688 = vpack.c.bf16 %v676, %v676
      %v689 = vpack.c.bf16 %v677, %v677
      %v690 = vpack.c.bf16 %v678, %v678
      %v691 = vpack.c.bf16 %v679, %v679
      %v692 = vpack.c.bf16 %v680, %v680
      %v693 = vpack.c.bf16 %v681, %v681
      %v694 = vpack.c.bf16 %v682, %v682
      %p695 = scmp.gt.s32.totalorder %s25, 0
      %s696 = scalar_select %p695, 1, 0
      %s697 = scvt.s32.f32 %s696
      %p699 = scmp.ne.f32.partialorder %s697, %s697
      %s700 = sshrl.u32 %s697, 16
      %s701 = sand.u32 %s700, 1
      %s702 = sadd.s32 32767, %s701
      %s703 = sadd.s32 %s697, %s702
      %s704 = sand.u32 %s703, 4294901760
      %s705 = scalar_select %p699, 2143289344, %s704
      %s707 = sshrl.u32 %s705, 16
      %p708 = scmp.lt.s32.totalorder %s25, 3
      %s709 = scalar_select %p708, 1, 0
      %s710 = scvt.s32.f32 %s709
      %p712 = scmp.ne.f32.partialorder %s710, %s710
      %s713 = sshrl.u32 %s710, 16
      %s714 = sand.u32 %s713, 1
      %s715 = sadd.s32 32767, %s714
      %s716 = sadd.s32 %s710, %s715
      %s717 = sand.u32 %s716, 4294901760
      %s718 = scalar_select %p712, 2143289344, %s717
      %s720 = sshrl.u32 %s718, 16
      %s721 = sshll.u32 %s707, 16
      %s722 = sor.u32 %s707, %s721
      %v723 = vstv %s722
      %v725 = vunpack.c.l.bf16 %v683
      %v726 = vunpack.c.l.bf16 %v684
      %v727 = vunpack.c.l.bf16 %v723
      %v728 = vmul.f32 %v725, %v727
      %v729 = vmul.f32 %v726, %v727
      %v730 = vpack.c.bf16 %v728, %v728
      %v731 = vpack.c.bf16 %v729, %v729
      %s732 = sshll.u32 %s720, 16
      %s733 = sor.u32 %s720, %s732
      %v734 = vstv %s733
      %v736 = vunpack.c.l.bf16 %v693
      %v737 = vunpack.c.l.bf16 %v694
      %v738 = vunpack.c.l.bf16 %v734
      %v739 = vmul.f32 %v736, %v738
      %v740 = vmul.f32 %v737, %v738
      %v741 = vpack.c.bf16 %v739, %v739
      %v742 = vpack.c.bf16 %v740, %v740
      %v755 = vunpack.c.l.b16 %v730
      %v756 = vunpack.c.l.b16 %v731
      %v757 = vunpack.c.l.b16 %v685
      %v758 = vunpack.c.l.b16 %v686
      %v759 = vunpack.c.l.b16 %v687
      %v760 = vunpack.c.l.b16 %v688
      %v761 = vunpack.c.l.b16 %v689
      %v762 = vunpack.c.l.b16 %v690
      %v763 = vunpack.c.l.b16 %v691
      %v764 = vunpack.c.l.b16 %v692
      %v765 = vunpack.c.l.b16 %v741
      %v766 = vunpack.c.l.b16 %v742
      %v767 = vpack.c.b16 %v756, %v755
      %v768 = vpack.c.b16 %v758, %v757
      %v769 = vpack.c.b16 %v760, %v759
      %v770 = vpack.c.b16 %v762, %v761
      %v771 = vpack.c.b16 %v764, %v763
      %v772 = vpack.c.b16 %v766, %v765
      %v774 = vshrl.u32 %v767, 16
      %v776 = vrot.slane %v774, 7
      %v777 = vshll.u32 %v767, 16
      %v779 = vor.u32 %v776, %v777
      %v781 = vshrl.u32 %v768, 16
      %v783 = vrot.slane %v781, 7
      %v784 = vshll.u32 %v768, 16
      %v786 = vor.u32 %v783, %v784
      %v788 = vshrl.u32 %v769, 16
      %v790 = vrot.slane %v788, 7
      %v791 = vshll.u32 %v769, 16
      %v793 = vor.u32 %v790, %v791
      %v795 = vshrl.u32 %v770, 16
      %v797 = vrot.slane %v795, 7
      %v798 = vshll.u32 %v770, 16
      %v800 = vor.u32 %v797, %v798
      %v802 = vshrl.u32 %v771, 16
      %v804 = vrot.slane %v802, 7
      %v805 = vshll.u32 %v771, 16
      %v807 = vor.u32 %v804, %v805
      %v809 = vshrl.u32 %v772, 16
      %v811 = vrot.slane %v809, 7
      %v812 = vshll.u32 %v772, 16
      %v814 = vor.u32 %v811, %v812
      %vm821 = vcmask 1040384
      %vm822 = vsmask.f32 256
      %vm823 = vmand %vm821, %vm822
      %v824 = vsel %vm823, 0, %v779
      %v825 = vsel %vm823, 0, %v786
      %v826 = vsel %vm823, 0, %v793
      %v827 = vsel %vm823, 0, %v800
      %v828 = vsel %vm823, 0, %v807
      %v829 = vsel %vm823, 0, %v814
      %v830 = vrot.slane %v777, 1
      %v831 = vor.u32 %v774, %v830
      %v832 = vrot.slane %v784, 1
      %v833 = vor.u32 %v781, %v832
      %v834 = vrot.slane %v791, 1
      %v835 = vor.u32 %v788, %v834
      %v836 = vrot.slane %v798, 1
      %v837 = vor.u32 %v795, %v836
      %v838 = vrot.slane %v805, 1
      %v839 = vor.u32 %v802, %v838
      %v840 = vrot.slane %v812, 1
      %v841 = vor.u32 %v809, %v840
      %vm848 = vcmask 1047552
      %vm849 = vsmask.f32 7424
      %vm850 = vmand %vm848, %vm849
      %v851 = vsel %vm850, %v831, 0
      %v852 = vsel %vm850, %v833, 0
      %v853 = vsel %vm850, %v835, 0
      %v854 = vsel %vm850, %v837, 0
      %v855 = vsel %vm850, %v839, 0
      %v856 = vsel %vm850, %v841, 0
      %v857 = vld [vmem:[%s5] sm:$0xf]
      %v858 = vld [vmem:[%s5 + $0x4] sm:$0x1]
      %v860 = vpack.i.b16 %v857, %v857
      %v862 = vperm.slane %v860, 0
      %v863 = vunpack.c.l.bf16 %v824
      %v864 = vunpack.c.h.bf16 %v824
      %v865 = vunpack.c.l.bf16 %v825
      %v866 = vunpack.c.h.bf16 %v825
      %v867 = vunpack.c.l.bf16 %v826
      %v868 = vunpack.c.h.bf16 %v826
      %v869 = vunpack.c.l.bf16 %v827
      %v870 = vunpack.c.h.bf16 %v827
      %v871 = vunpack.c.l.bf16 %v862
      %v872 = vmul.f32 %v863, %v871
      %v873 = vmul.f32 %v864, %v871
      %v874 = vmul.f32 %v865, %v871
      %v875 = vmul.f32 %v866, %v871
      %v876 = vmul.f32 %v867, %v871
      %v877 = vmul.f32 %v868, %v871
      %v878 = vmul.f32 %v869, %v871
      %v879 = vmul.f32 %v870, %v871
      %v880 = vpack.c.bf16 %v872, %v872
      %v881 = vpack.c.bf16 %v873, %v873
      %v882 = vpack.c.bf16 %v874, %v874
      %v883 = vpack.c.bf16 %v875, %v875
      %v884 = vpack.c.bf16 %v876, %v876
      %v885 = vpack.c.bf16 %v877, %v877
      %v886 = vpack.c.bf16 %v878, %v878
      %v887 = vpack.c.bf16 %v879, %v879
      %v888 = vunpack.c.l.bf16 %v880
      %v889 = vunpack.c.l.bf16 %v881
      %v890 = vunpack.c.l.bf16 %v882
      %v891 = vunpack.c.l.bf16 %v883
      %v892 = vunpack.c.l.bf16 %v884
      %v893 = vunpack.c.l.bf16 %v885
      %v894 = vunpack.c.l.bf16 %v886
      %v895 = vunpack.c.l.bf16 %v887
      %v896 = vadd.f32 %v888, 0.0
      %v897 = vadd.f32 %v889, 0.0
      %v898 = vadd.f32 %v890, 0.0
      %v899 = vadd.f32 %v891, 0.0
      %v900 = vadd.f32 %v892, 0.0
      %v901 = vadd.f32 %v893, 0.0
      %v902 = vadd.f32 %v894, 0.0
      %v903 = vadd.f32 %v895, 0.0
      %v904 = vshrl.u32 %v857, 16
      %v905 = vpack.i.b16 %v904, %v904
      %v907 = vperm.slane %v905, 0
      %v908 = vunpack.c.l.bf16 %v730
      %v909 = vunpack.c.l.bf16 %v731
      %v910 = vunpack.c.l.bf16 %v685
      %v911 = vunpack.c.l.bf16 %v686
      %v912 = vunpack.c.l.bf16 %v687
      %v913 = vunpack.c.l.bf16 %v688
      %v914 = vunpack.c.l.bf16 %v689
      %v915 = vunpack.c.l.bf16 %v690
      %v916 = vunpack.c.l.bf16 %v907
      %v917 = vmul.f32 %v908, %v916
      %v918 = vmul.f32 %v909, %v916
      %v919 = vmul.f32 %v910, %v916
      %v920 = vmul.f32 %v911, %v916
      %v921 = vmul.f32 %v912, %v916
      %v922 = vmul.f32 %v913, %v916
      %v923 = vmul.f32 %v914, %v916
      %v924 = vmul.f32 %v915, %v916
      %v925 = vpack.c.bf16 %v917, %v917
      %v926 = vpack.c.bf16 %v918, %v918
      %v927 = vpack.c.bf16 %v919, %v919
      %v928 = vpack.c.bf16 %v920, %v920
      %v929 = vpack.c.bf16 %v921, %v921
      %v930 = vpack.c.bf16 %v922, %v922
      %v931 = vpack.c.bf16 %v923, %v923
      %v932 = vpack.c.bf16 %v924, %v924
      %v933 = vunpack.c.l.bf16 %v925
      %v934 = vunpack.c.l.bf16 %v926
      %v935 = vunpack.c.l.bf16 %v927
      %v936 = vunpack.c.l.bf16 %v928
      %v937 = vunpack.c.l.bf16 %v929
      %v938 = vunpack.c.l.bf16 %v930
      %v939 = vunpack.c.l.bf16 %v931
      %v940 = vunpack.c.l.bf16 %v932
      %v941 = vadd.f32 %v896, %v933
      %v942 = vadd.f32 %v897, %v934
      %v943 = vadd.f32 %v898, %v935
      %v944 = vadd.f32 %v899, %v936
      %v945 = vadd.f32 %v900, %v937
      %v946 = vadd.f32 %v901, %v938
      %v947 = vadd.f32 %v902, %v939
      %v948 = vadd.f32 %v903, %v940
      %v949 = vperm.slane %v860, 1
      %v950 = vunpack.c.l.bf16 %v851
      %v951 = vunpack.c.h.bf16 %v851
      %v952 = vunpack.c.l.bf16 %v852
      %v953 = vunpack.c.h.bf16 %v852
      %v954 = vunpack.c.l.bf16 %v853
      %v955 = vunpack.c.h.bf16 %v853
      %v956 = vunpack.c.l.bf16 %v854
      %v957 = vunpack.c.h.bf16 %v854
      %v958 = vunpack.c.l.bf16 %v949
      %v959 = vmul.f32 %v950, %v958
      %v960 = vmul.f32 %v951, %v958
      %v961 = vmul.f32 %v952, %v958
      %v962 = vmul.f32 %v953, %v958
      %v963 = vmul.f32 %v954, %v958
      %v964 = vmul.f32 %v955, %v958
      %v965 = vmul.f32 %v956, %v958
      %v966 = vmul.f32 %v957, %v958
      %v967 = vpack.c.bf16 %v959, %v959
      %v968 = vpack.c.bf16 %v960, %v960
      %v969 = vpack.c.bf16 %v961, %v961
      %v970 = vpack.c.bf16 %v962, %v962
      %v971 = vpack.c.bf16 %v963, %v963
      %v972 = vpack.c.bf16 %v964, %v964
      %v973 = vpack.c.bf16 %v965, %v965
      %v974 = vpack.c.bf16 %v966, %v966
      %v975 = vunpack.c.l.bf16 %v967
      %v976 = vunpack.c.l.bf16 %v968
      %v977 = vunpack.c.l.bf16 %v969
      %v978 = vunpack.c.l.bf16 %v970
      %v979 = vunpack.c.l.bf16 %v971
      %v980 = vunpack.c.l.bf16 %v972
      %v981 = vunpack.c.l.bf16 %v973
      %v982 = vunpack.c.l.bf16 %v974
      %v983 = vadd.f32 %v941, %v975
      %v984 = vadd.f32 %v942, %v976
      %v985 = vadd.f32 %v943, %v977
      %v986 = vadd.f32 %v944, %v978
      %v987 = vadd.f32 %v945, %v979
      %v988 = vadd.f32 %v946, %v980
      %v989 = vadd.f32 %v947, %v981
      %v990 = vadd.f32 %v948, %v982
      %v991 = vperm.slane %v905, 1
      %v992 = vunpack.c.l.bf16 %v828
      %v993 = vunpack.c.h.bf16 %v828
      %v994 = vunpack.c.l.bf16 %v991
      %v995 = vmul.f32 %v865, %v994
      %v996 = vmul.f32 %v866, %v994
      %v997 = vmul.f32 %v867, %v994
      %v998 = vmul.f32 %v868, %v994
      %v999 = vmul.f32 %v869, %v994
      %v1000 = vmul.f32 %v870, %v994
      %v1001 = vmul.f32 %v992, %v994
      %v1002 = vmul.f32 %v993, %v994
      %v1003 = vpack.c.bf16 %v995, %v995
      %v1004 = vpack.c.bf16 %v996, %v996
      %v1005 = vpack.c.bf16 %v997, %v997
      %v1006 = vpack.c.bf16 %v998, %v998
      %v1007 = vpack.c.bf16 %v999, %v999
      %v1008 = vpack.c.bf16 %v1000, %v1000
      %v1009 = vpack.c.bf16 %v1001, %v1001
      %v1010 = vpack.c.bf16 %v1002, %v1002
      %v1011 = vunpack.c.l.bf16 %v1003
      %v1012 = vunpack.c.l.bf16 %v1004
      %v1013 = vunpack.c.l.bf16 %v1005
      %v1014 = vunpack.c.l.bf16 %v1006
      %v1015 = vunpack.c.l.bf16 %v1007
      %v1016 = vunpack.c.l.bf16 %v1008
      %v1017 = vunpack.c.l.bf16 %v1009
      %v1018 = vunpack.c.l.bf16 %v1010
      %v1019 = vadd.f32 %v983, %v1011
      %v1020 = vadd.f32 %v984, %v1012
      %v1021 = vadd.f32 %v985, %v1013
      %v1022 = vadd.f32 %v986, %v1014
      %v1023 = vadd.f32 %v987, %v1015
      %v1024 = vadd.f32 %v988, %v1016
      %v1025 = vadd.f32 %v989, %v1017
      %v1026 = vadd.f32 %v990, %v1018
      %v1027 = vperm.slane %v860, 2
      %v1028 = vunpack.c.l.bf16 %v691
      %v1029 = vunpack.c.l.bf16 %v692
      %v1030 = vunpack.c.l.bf16 %v1027
      %v1031 = vmul.f32 %v910, %v1030
      %v1032 = vmul.f32 %v911, %v1030
      %v1033 = vmul.f32 %v912, %v1030
      %v1034 = vmul.f32 %v913, %v1030
      %v1035 = vmul.f32 %v914, %v1030
      %v1036 = vmul.f32 %v915, %v1030
      %v1037 = vmul.f32 %v1028, %v1030
      %v1038 = vmul.f32 %v1029, %v1030
      %v1039 = vpack.c.bf16 %v1031, %v1031
      %v1040 = vpack.c.bf16 %v1032, %v1032
      %v1041 = vpack.c.bf16 %v1033, %v1033
      %v1042 = vpack.c.bf16 %v1034, %v1034
      %v1043 = vpack.c.bf16 %v1035, %v1035
      %v1044 = vpack.c.bf16 %v1036, %v1036
      %v1045 = vpack.c.bf16 %v1037, %v1037
      %v1046 = vpack.c.bf16 %v1038, %v1038
      %v1047 = vunpack.c.l.bf16 %v1039
      %v1048 = vunpack.c.l.bf16 %v1040
      %v1049 = vunpack.c.l.bf16 %v1041
      %v1050 = vunpack.c.l.bf16 %v1042
      %v1051 = vunpack.c.l.bf16 %v1043
      %v1052 = vunpack.c.l.bf16 %v1044
      %v1053 = vunpack.c.l.bf16 %v1045
      %v1054 = vunpack.c.l.bf16 %v1046
      %v1055 = vadd.f32 %v1019, %v1047
      %v1056 = vadd.f32 %v1020, %v1048
      %v1057 = vadd.f32 %v1021, %v1049
      %v1058 = vadd.f32 %v1022, %v1050
      %v1059 = vadd.f32 %v1023, %v1051
      %v1060 = vadd.f32 %v1024, %v1052
      %v1061 = vadd.f32 %v1025, %v1053
      %v1062 = vadd.f32 %v1026, %v1054
      %v1063 = vperm.slane %v905, 2
      %v1064 = vunpack.c.l.bf16 %v855
      %v1065 = vunpack.c.h.bf16 %v855
      %v1066 = vunpack.c.l.bf16 %v1063
      %v1067 = vmul.f32 %v952, %v1066
      %v1068 = vmul.f32 %v953, %v1066
      %v1069 = vmul.f32 %v954, %v1066
      %v1070 = vmul.f32 %v955, %v1066
      %v1071 = vmul.f32 %v956, %v1066
      %v1072 = vmul.f32 %v957, %v1066
      %v1073 = vmul.f32 %v1064, %v1066
      %v1074 = vmul.f32 %v1065, %v1066
      %v1075 = vpack.c.bf16 %v1067, %v1067
      %v1076 = vpack.c.bf16 %v1068, %v1068
      %v1077 = vpack.c.bf16 %v1069, %v1069
      %v1078 = vpack.c.bf16 %v1070, %v1070
      %v1079 = vpack.c.bf16 %v1071, %v1071
      %v1080 = vpack.c.bf16 %v1072, %v1072
      %v1081 = vpack.c.bf16 %v1073, %v1073
      %v1082 = vpack.c.bf16 %v1074, %v1074
      %v1083 = vunpack.c.l.bf16 %v1075
      %v1084 = vunpack.c.l.bf16 %v1076
      %v1085 = vunpack.c.l.bf16 %v1077
      %v1086 = vunpack.c.l.bf16 %v1078
      %v1087 = vunpack.c.l.bf16 %v1079
      %v1088 = vunpack.c.l.bf16 %v1080
      %v1089 = vunpack.c.l.bf16 %v1081
      %v1090 = vunpack.c.l.bf16 %v1082
      %v1091 = vadd.f32 %v1055, %v1083
      %v1092 = vadd.f32 %v1056, %v1084
      %v1093 = vadd.f32 %v1057, %v1085
      %v1094 = vadd.f32 %v1058, %v1086
      %v1095 = vadd.f32 %v1059, %v1087
      %v1096 = vadd.f32 %v1060, %v1088
      %v1097 = vadd.f32 %v1061, %v1089
      %v1098 = vadd.f32 %v1062, %v1090
      %v1099 = vperm.slane %v860, 3
      %v1100 = vunpack.c.l.bf16 %v829
      %v1101 = vunpack.c.h.bf16 %v829
      %v1102 = vunpack.c.l.bf16 %v1099
      %v1103 = vmul.f32 %v867, %v1102
      %v1104 = vmul.f32 %v868, %v1102
      %v1105 = vmul.f32 %v869, %v1102
      %v1106 = vmul.f32 %v870, %v1102
      %v1107 = vmul.f32 %v992, %v1102
      %v1108 = vmul.f32 %v993, %v1102
      %v1109 = vmul.f32 %v1100, %v1102
      %v1110 = vmul.f32 %v1101, %v1102
      %v1111 = vpack.c.bf16 %v1103, %v1103
      %v1112 = vpack.c.bf16 %v1104, %v1104
      %v1113 = vpack.c.bf16 %v1105, %v1105
      %v1114 = vpack.c.bf16 %v1106, %v1106
      %v1115 = vpack.c.bf16 %v1107, %v1107
      %v1116 = vpack.c.bf16 %v1108, %v1108
      %v1117 = vpack.c.bf16 %v1109, %v1109
      %v1118 = vpack.c.bf16 %v1110, %v1110
      %v1119 = vunpack.c.l.bf16 %v1111
      %v1120 = vunpack.c.l.bf16 %v1112
      %v1121 = vunpack.c.l.bf16 %v1113
      %v1122 = vunpack.c.l.bf16 %v1114
      %v1123 = vunpack.c.l.bf16 %v1115
      %v1124 = vunpack.c.l.bf16 %v1116
      %v1125 = vunpack.c.l.bf16 %v1117
      %v1126 = vunpack.c.l.bf16 %v1118
      %v1127 = vadd.f32 %v1091, %v1119
      %v1128 = vadd.f32 %v1092, %v1120
      %v1129 = vadd.f32 %v1093, %v1121
      %v1130 = vadd.f32 %v1094, %v1122
      %v1131 = vadd.f32 %v1095, %v1123
      %v1132 = vadd.f32 %v1096, %v1124
      %v1133 = vadd.f32 %v1097, %v1125
      %v1134 = vadd.f32 %v1098, %v1126
      %v1135 = vperm.slane %v905, 3
      %v1136 = vunpack.c.l.bf16 %v741
      %v1137 = vunpack.c.l.bf16 %v742
      %v1138 = vunpack.c.l.bf16 %v1135
      %v1139 = vmul.f32 %v912, %v1138
      %v1140 = vmul.f32 %v913, %v1138
      %v1141 = vmul.f32 %v914, %v1138
      %v1142 = vmul.f32 %v915, %v1138
      %v1143 = vmul.f32 %v1028, %v1138
      %v1144 = vmul.f32 %v1029, %v1138
      %v1145 = vmul.f32 %v1136, %v1138
      %v1146 = vmul.f32 %v1137, %v1138
      %v1147 = vpack.c.bf16 %v1139, %v1139
      %v1148 = vpack.c.bf16 %v1140, %v1140
      %v1149 = vpack.c.bf16 %v1141, %v1141
      %v1150 = vpack.c.bf16 %v1142, %v1142
      %v1151 = vpack.c.bf16 %v1143, %v1143
      %v1152 = vpack.c.bf16 %v1144, %v1144
      %v1153 = vpack.c.bf16 %v1145, %v1145
      %v1154 = vpack.c.bf16 %v1146, %v1146
      %v1155 = vunpack.c.l.bf16 %v1147
      %v1156 = vunpack.c.l.bf16 %v1148
      %v1157 = vunpack.c.l.bf16 %v1149
      %v1158 = vunpack.c.l.bf16 %v1150
      %v1159 = vunpack.c.l.bf16 %v1151
      %v1160 = vunpack.c.l.bf16 %v1152
      %v1161 = vunpack.c.l.bf16 %v1153
      %v1162 = vunpack.c.l.bf16 %v1154
      %v1163 = vadd.f32 %v1127, %v1155
      %v1164 = vadd.f32 %v1128, %v1156
      %v1165 = vadd.f32 %v1129, %v1157
      %v1166 = vadd.f32 %v1130, %v1158
      %v1167 = vadd.f32 %v1131, %v1159
      %v1168 = vadd.f32 %v1132, %v1160
      %v1169 = vadd.f32 %v1133, %v1161
      %v1170 = vadd.f32 %v1134, %v1162
      %v1172 = vpack.i.b16 %v858, %v858
      %v1174 = vperm.slane %v1172, 0
      %v1175 = vunpack.c.l.bf16 %v856
      %v1176 = vunpack.c.h.bf16 %v856
      %v1177 = vunpack.c.l.bf16 %v1174
      %v1178 = vmul.f32 %v954, %v1177
      %v1179 = vmul.f32 %v955, %v1177
      %v1180 = vmul.f32 %v956, %v1177
      %v1181 = vmul.f32 %v957, %v1177
      %v1182 = vmul.f32 %v1064, %v1177
      %v1183 = vmul.f32 %v1065, %v1177
      %v1184 = vmul.f32 %v1175, %v1177
      %v1185 = vmul.f32 %v1176, %v1177
      %v1186 = vpack.c.bf16 %v1178, %v1178
      %v1187 = vpack.c.bf16 %v1179, %v1179
      %v1188 = vpack.c.bf16 %v1180, %v1180
      %v1189 = vpack.c.bf16 %v1181, %v1181
      %v1190 = vpack.c.bf16 %v1182, %v1182
      %v1191 = vpack.c.bf16 %v1183, %v1183
      %v1192 = vpack.c.bf16 %v1184, %v1184
      %v1193 = vpack.c.bf16 %v1185, %v1185
      %v1194 = vunpack.c.l.bf16 %v1186
      %v1195 = vunpack.c.l.bf16 %v1187
      %v1196 = vunpack.c.l.bf16 %v1188
      %v1197 = vunpack.c.l.bf16 %v1189
      %v1198 = vunpack.c.l.bf16 %v1190
      %v1199 = vunpack.c.l.bf16 %v1191
      %v1200 = vunpack.c.l.bf16 %v1192
      %v1201 = vunpack.c.l.bf16 %v1193
      %v1202 = vadd.f32 %v1163, %v1194
      %v1203 = vadd.f32 %v1164, %v1195
      %v1204 = vadd.f32 %v1165, %v1196
      %v1205 = vadd.f32 %v1166, %v1197
      %v1206 = vadd.f32 %v1167, %v1198
      %v1207 = vadd.f32 %v1168, %v1199
      %v1208 = vadd.f32 %v1169, %v1200
      %v1209 = vadd.f32 %v1170, %v1201
      %v1210 = vld [vmem:[%s6] sm:$0x1]
      %v1212 = vperm.slane %v1210, 0
      %v1214 = vadd.f32 %v1202, %v1212
      %v1215 = vadd.f32 %v1203, %v1212
      %v1216 = vadd.f32 %v1204, %v1212
      %v1217 = vadd.f32 %v1205, %v1212
      %v1218 = vadd.f32 %v1206, %v1212
      %v1219 = vadd.f32 %v1207, %v1212
      %v1220 = vadd.f32 %v1208, %v1212
      %v1221 = vadd.f32 %v1209, %v1212
      %v1222 = vsub.f32 0.0, %v1214
      %v1223 = vsub.f32 0.0, %v1215
      %v1224 = vsub.f32 0.0, %v1216
      %v1225 = vsub.f32 0.0, %v1217
      %v1226 = vsub.f32 0.0, %v1218
      %v1227 = vsub.f32 0.0, %v1219
      %v1228 = vsub.f32 0.0, %v1220
      %v1229 = vsub.f32 0.0, %v1221
      %v1230 = vmul.f32 %v1222, 1.442695
      %v1231 = vpow.pop %v1230
      %v1232 = vmul.f32 %v1223, 1.442695
      %v1233 = vpow.pop %v1232
      %v1234 = vmul.f32 %v1224, 1.442695
      %v1235 = vpow.pop %v1234
      %v1236 = vmul.f32 %v1225, 1.442695
      %v1237 = vpow.pop %v1236
      %v1238 = vmul.f32 %v1226, 1.442695
      %v1239 = vpow.pop %v1238
      %v1240 = vmul.f32 %v1227, 1.442695
      %v1241 = vpow.pop %v1240
      %v1242 = vmul.f32 %v1228, 1.442695
      %v1243 = vpow.pop %v1242
      %v1244 = vmul.f32 %v1229, 1.442695
      %v1245 = vpow.pop %v1244
      %v1246 = vadd.f32 %v1231, 1.0
      %v1247 = vadd.f32 %v1233, 1.0
      %v1248 = vadd.f32 %v1235, 1.0
      %v1249 = vadd.f32 %v1237, 1.0
      %v1250 = vadd.f32 %v1239, 1.0
      %v1251 = vadd.f32 %v1241, 1.0
      %v1252 = vadd.f32 %v1243, 1.0
      %v1253 = vadd.f32 %v1245, 1.0
      %v1254 = vrcp.pop %v1246
      %v1255 = vrcp.pop %v1247
      %v1256 = vrcp.pop %v1248
      %v1257 = vrcp.pop %v1249
      %v1258 = vrcp.pop %v1250
      %v1259 = vrcp.pop %v1251
      %v1260 = vrcp.pop %v1252
      %v1261 = vrcp.pop %v1253
      %v1262 = vmul.f32 %v1214, %v1254
      %v1263 = vmul.f32 %v1215, %v1255
      %v1264 = vmul.f32 %v1216, %v1256
      %v1265 = vmul.f32 %v1217, %v1257
      %v1266 = vmul.f32 %v1218, %v1258
      %v1267 = vmul.f32 %v1219, %v1259
      %v1268 = vmul.f32 %v1220, %v1260
      %v1269 = vmul.f32 %v1221, %v1261
      %v1270 = vpack.c.bf16 %v1263, %v1262
      %v1271 = vpack.c.bf16 %v1265, %v1264
      %v1272 = vpack.c.bf16 %v1267, %v1266
      %v1273 = vpack.c.bf16 %v1269, %v1268
      %v1274 = vld [vmem:[%s7] sm:$0xf]
      %v1275 = vld [vmem:[%s7 + $0x4] sm:$0xf]
      %v1276 = vld [vmem:[%s7 + $0x8] sm:$0xf]
      %v1277 = vld [vmem:[%s7 + $0xc] sm:$0xf]
      %v1278 = vld [vmem:[%s8] sm:$0x1]
      %v1280 = vperm.slane %v1278, 0
      %v1286 = vunpack.c.l.b16 %v1274
      %v1287 = vunpack.c.l.b16 %v1275
      %v1288 = vunpack.c.l.b16 %v1276
      %v1289 = vunpack.c.l.b16 %v1277
      %v1290 = vpack.c.b16 %v1287, %v1286
      %v1291 = vpack.c.b16 %v1289, %v1288
      %vm1294 = vcmask 261120
      %v1296 = vsel %vm1294, %v1270, 0
      %v1299 = vsel %vm1294, %v1271, 0
      %v1302 = vsel %vm1294, %v1272, 0
      %v1305 = vsel %vm1294, %v1273, 0
      %1307 = vmatpush.bf16.msra.mxu0 0
      %1308 = vmatpush.bf16.msra.mxu0 0
      %1309 = vmatpush.bf16.msra.mxu0 0
      %1310 = vmatpush.bf16.msra.mxu0 0
      %1311 = vmatpush.bf16.msra.mxu0 0
      %1312 = vmatpush.bf16.msra.mxu0 0
      %1313 = vmatpush.bf16.msra.mxu0 %v1291
      %1314 = vmatpush.bf16.msra.mxu0 %v1290
      %1315 = vmatmul.bf16.gmra.mxu0 %v1296
      %v1316 = vpop.f32.mrf.mxu0
      %v1317 = vadd.f32 %v1280, %v1316
      %v1318 = vpop.f32.mrf.mxu0
      %v1319 = vadd.f32 %v1280, %v1318
      %1320 = vmatmul.bf16.gmra.mxu0 %v1299
      %v1321 = vpop.f32.mrf.mxu0
      %v1322 = vadd.f32 %v1280, %v1321
      %v1323 = vpop.f32.mrf.mxu0
      %v1324 = vadd.f32 %v1280, %v1323
      %1325 = vmatmul.bf16.gmra.mxu0 %v1302
      %v1326 = vpop.f32.mrf.mxu0
      %v1327 = vadd.f32 %v1280, %v1326
      %v1328 = vpop.f32.mrf.mxu0
      %v1329 = vadd.f32 %v1280, %v1328
      %1330 = vmatmul.bf16.gmra.mxu0 %v1305
      %v1331 = vpop.f32.mrf.mxu0
      %v1332 = vadd.f32 %v1280, %v1331
      %v1333 = vpop.f32.mrf.mxu0
      %v1334 = vadd.f32 %v1280, %v1333
      %1335 = vdwg.mxu0
      %v1336 = vunpack.c.l.bf16 %v504
      %v1337 = vunpack.c.l.bf16 %v505
      %v1338 = vunpack.c.l.bf16 %v506
      %v1339 = vunpack.c.l.bf16 %v507
      %v1340 = vunpack.c.l.bf16 %v508
      %v1341 = vunpack.c.l.bf16 %v509
      %v1342 = vunpack.c.l.bf16 %v510
      %v1343 = vunpack.c.l.bf16 %v511
      %v1344 = vadd.f32 %v1317, %v1336
      %v1345 = vadd.f32 %v1319, %v1337
      %v1346 = vadd.f32 %v1322, %v1338
      %v1347 = vadd.f32 %v1324, %v1339
      %v1348 = vadd.f32 %v1327, %v1340
      %v1349 = vadd.f32 %v1329, %v1341
      %v1350 = vadd.f32 %v1332, %v1342
      %v1351 = vadd.f32 %v1334, %v1343
      %1352 = vst.msk [vmem:[%s499] sm:$0xff] %vm549, %v1344
      %1353 = vst.msk [vmem:[%s499 + $0x8] sm:$0xff] %vm549, %v1345
      %1354 = vst.msk [vmem:[%s499 + $0x10] sm:$0xff] %vm549, %v1346
      %1355 = vst.msk [vmem:[%s499 + $0x18] sm:$0xff] %vm549, %v1347
      %1356 = vst.msk [vmem:[%s499 + $0x20] sm:$0xff] %vm549, %v1348
      %1357 = vst.msk [vmem:[%s499 + $0x28] sm:$0xff] %vm549, %v1349
      %1358 = vst.msk [vmem:[%s499 + $0x30] sm:$0xff] %vm549, %v1350
      %1359 = vst.msk [vmem:[%s499 + $0x38] sm:$0xff] %vm549, %v1351
      %s1360 = smul.u32 4, %s25
      %p1361 = scmp.lt.s32.totalorder %s24, 1
      %s1362 = scalar_select %p1361, %s24, 1
      %p1363 = scmp.lt.s32.totalorder %s1360, 15
      %s1364 = scalar_select %p1363, %s1360, 15
      %s1365 = smul.addr %s1364, 2
      %s1366 = smul.addr %s1362, 32
      %s1367 = sadd.s32 %s1365, %s1366
      %s1368 = smul.addr %s1367, 8
      %s1369 = scalar_lea.vmem %s9, %s1368
      // Predicated region
      $region57: #{tpu_custom_call.1} parent=55 // pred_check
        %p1370 = pneg %p278
      $region58: #{tpu_custom_call.1} parent=55 // pred_check_branch
        %1372 = sbr.rel (%p1370) target = $region60
      $region59: #{tpu_custom_call.1} parent=55 // pred_region
        %s1373 = smul.u32 4, %s25
      $region60: #{tpu_custom_call.1} parent=55 // pred_fallthru
        _
    $region56: #{tpu_custom_call.1} parent=5 // pred_fallthru
      _
    %p1374 = scmp.le.s32.totalorder 2, %s15
    // Predicated region
    $region61: #{tpu_custom_call.1} parent=5 // pred_check
      %p1375 = pneg %p1374
    $region62: #{tpu_custom_call.1} parent=5 // pred_check_branch
      %1377 = sbr.rel (%p1375) target = $region64
    $region63: #{tpu_custom_call.1} parent=5 // pred_region
      %s1378 = ssub.s32 %s15, 2
      // Predicated region
      $region65: #{tpu_custom_call.1} parent=63 // pred_check
        %p1379 = pneg %p284
      $region66: #{tpu_custom_call.1} parent=63 // pred_check_branch
        %1381 = sbr.rel (%p1379) target = $region68
      $region67: #{tpu_custom_call.1} parent=63 // pred_region
        %s1382 = smul.u32 4, %s27
        %p1383 = scmp.lt.s32.totalorder %s26, 1
        %s1384 = scalar_select %p1383, %s26, 1
        %p1385 = scmp.lt.s32.totalorder %s1382, 15
        %s1386 = scalar_select %p1385, %s1382, 15
        %s1387 = smul.addr %s1386, 2
        %s1388 = smul.addr %s1384, 32
        %s1389 = sadd.s32 %s1387, %s1388
        %s1390 = smul.addr %s1389, 8
        %s1391 = scalar_lea.vmem %s9, %s1390
      $region68: #{tpu_custom_call.1} parent=63 // pred_fallthru
        _
    $region64: #{tpu_custom_call.1} parent=5 // pred_fallthru
      _
  $region6: #{tpu_custom_call.1} parent=0 // loop_footer
    %s19 = sadd.s32 1, %s15
  $region7: #{tpu_custom_call.1} parent=0 // loop_footer_branch
    %14 = sbr.rel target = $region3
  $region8: #{tpu_custom_call.1} parent=0 // loop_exit
    _

</llo_original>
